<compile_context>
chip_gen: v5e
topology: v5e:2x2
jax: 0.10.0
libtpu: 0.0.40
codegen_flags: <defaults>
</compile_context>

<pallas_src>
import functools

import jax
import jax.numpy as jnp
from jax.experimental import pallas as pl
from jax.experimental.pallas import tpu as pltpu


def _round_up(x, m):
    return (x + m - 1) // m * m


# ----------------------------------------------------------------------------
# Fused DoubleConv kernel: conv3x3+bias+ReLU -> conv3x3+bias+ReLU
# ----------------------------------------------------------------------------
def _double_conv_kernel(x_ref, w1_ref, b1_ref, w2_ref, b2_ref, m_ref,
                        o_ref, p1_ref, f_ref, p2_ref, *, Wp, Fp, S, Cin, Cmid):
    # tap t = ki*3 + kj  ->  flat lane offset of that tap relative to the output
    offs = [(ki - 1) * Wp + (kj - 1) for ki in range(3) for kj in range(3)]
    mask = m_ref[...]                                       # (1, Fp) f32 interior mask

    # ---- conv1: stack 9 shifted bf16 views of the input frame along K (im2col in VMEM)
    for t, d in enumerate(offs):
        p1_ref[pl.ds(t * Cin, Cin), :] = x_ref[0, :, pl.ds(S + d, Fp)]
    h = jnp.dot(w1_ref[...], p1_ref[...],
                preferred_element_type=jnp.float32)          # (Cmid, Fp) f32 acc
    h = jnp.maximum(h + b1_ref[...], 0.0) * mask             # bias + ReLU, zero ring/tail

    # ---- intermediate frame (bf16): zero only the slack wings; interior is overwritten
    zeros_s = jnp.zeros((Cmid, S), dtype=f_ref.dtype)
    f_ref[:, pl.ds(0, S)] = zeros_s
    f_ref[:, pl.ds(S + Fp, S)] = zeros_s
    f_ref[:, pl.ds(S, Fp)] = h.astype(f_ref.dtype)

    # ---- conv2: same im2col pattern, reading the VMEM-resident frame
    for t, d in enumerate(offs):
        p2_ref[pl.ds(t * Cmid, Cmid), :] = f_ref[:, pl.ds(S + d, Fp)]
    y = jnp.dot(w2_ref[...], p2_ref[...],
                preferred_element_type=jnp.float32)          # (Cout, Fp) f32 acc
    # No mask on y: border/tail lanes are sliced away on the host.
    y = jnp.maximum(y + b2_ref[...], 0.0)

    o_ref[0] = y.astype(o_ref.dtype)


def double_conv(x, w1, b1, w2, b2):
    """x: (B, Cin, H, W) f32; w*: (Cout, Cin, 3, 3) PyTorch layout; b*: (Cout,)."""
    B, Cin, H, W = x.shape
    C1 = w1.shape[0]
    C2 = w2.shape[0]
    Hp, Wp = H + 2, W + 2
    F = Hp * Wp                      # flattened (padded) frame length
    Fp = _round_up(F, 128)           # lane-dense frame length
    S = 128                          # slack (>= Wp+1, lane aligned) so taps stay in-bounds
    assert S >= Wp + 1, "image too wide for fixed slack"
    FB = Fp + 2 * S
    Cin_p = _round_up(Cin, 16)       # full bf16 sublane pack per tap group

    # Zero-padded frame (channel pad + spatial ring), flattened, plus slack; bf16 at HBM.
    xf = jnp.pad(x, ((0, 0), (0, Cin_p - Cin), (1, 1), (1, 1))).reshape(B, Cin_p, F)
    xf = jnp.pad(xf, ((0, 0), (0, 0), (S, FB - F - S))).astype(jnp.bfloat16)

    def prep_w(w, cin_pad):
        # (Cout, Cin, 3, 3) -> (Cout, 9*cin_pad) with K index = (ki*3+kj)*cin_pad + c
        co, ci = w.shape[0], w.shape[1]
        w = jnp.pad(w, ((0, 0), (0, cin_pad - ci), (0, 0), (0, 0)))
        return w.transpose(0, 2, 3, 1).reshape(co, -1).astype(jnp.bfloat16)

    w1m = prep_w(w1, Cin_p)
    w2m = prep_w(w2, C1)             # C1 (=32 here) already a sublane-pack multiple
    b1c = b1.reshape(C1, 1).astype(jnp.float32)
    b2c = b2.reshape(C2, 1).astype(jnp.float32)

    rr = jnp.arange(Hp)
    ss = jnp.arange(Wp)
    interior = ((rr >= 1) & (rr <= H))[:, None] & ((ss >= 1) & (ss <= W))[None, :]
    mask = jnp.pad(interior.reshape(1, F).astype(jnp.float32),
                   ((0, 0), (0, Fp - F)))

    kern = functools.partial(_double_conv_kernel,
                             Wp=Wp, Fp=Fp, S=S, Cin=Cin_p, Cmid=C1)

    out = pl.pallas_call(
        kern,
        out_shape=jax.ShapeDtypeStruct((B, C2, Fp), jnp.float32),
        grid_spec=pltpu.PrefetchScalarGridSpec(
            num_scalar_prefetch=0,
            grid=(B,),
            in_specs=[
                pl.BlockSpec((1, Cin_p, FB), lambda b: (b, 0, 0)),
                pl.BlockSpec((C1, 9 * Cin_p), lambda b: (0, 0)),
                pl.BlockSpec((C1, 1), lambda b: (0, 0)),
                pl.BlockSpec((C2, 9 * C1), lambda b: (0, 0)),
                pl.BlockSpec((C2, 1), lambda b: (0, 0)),
                pl.BlockSpec((1, Fp), lambda b: (0, 0)),
            ],
            out_specs=pl.BlockSpec((1, C2, Fp), lambda b: (b, 0, 0)),
            scratch_shapes=[
                pltpu.VMEM((9 * Cin_p, Fp), jnp.bfloat16),   # stacked conv1 patches
                pltpu.VMEM((C1, FB), jnp.bfloat16),          # intermediate frame
                pltpu.VMEM((9 * C1, Fp), jnp.bfloat16),      # stacked conv2 patches
            ],
        ),
        compiler_params=pltpu.CompilerParams(
            dimension_semantics=("parallel",)),
    )(xf, w1m, b1c, w2m, b2c, mask)

    # Un-frame: drop the lane tail and the zero border ring (cheap XLA slice), stay NCHW.
    return out[:, :, :F].reshape(B, C2, Hp, Wp)[:, :, 1:H + 1, 1:W + 1]


# ----------------------------------------------------------------------------
# Pure-JAX reference (matches PyTorch DoubleConv forward)
# ----------------------------------------------------------------------------
def ref_double_conv(x, w1, b1, w2, b2):
    dn = ("NCHW", "OIHW", "NCHW")
    h = jax.lax.conv_general_dilated(x, w1, (1, 1), ((1, 1), (1, 1)),
                                     dimension_numbers=dn)
    h = jnp.maximum(h + b1[None, :, None, None], 0.0)
    y = jax.lax.conv_general_dilated(h, w2, (1, 1), ((1, 1), (1, 1)),
                                     dimension_numbers=dn)
    return jnp.maximum(y + b2[None, :, None, None], 0.0)


if __name__ == "__main__":
    key = jax.random.PRNGKey(0)
    k1, k2, k3, k4, kx = jax.random.split(key, 5)

    B, Cin, H, W = 2, 4, 16, 16
    Cout = 32                      # DoubleConv(input_channels=4, output_channels=32)

    x = jax.random.normal(kx, (B, Cin, H, W), jnp.float32)
    w1 = jax.random.normal(k1, (Cout, Cin, 3, 3), jnp.float32) * 0.1
    b1 = jax.random.normal(k2, (Cout,), jnp.float32) * 0.1
    w2 = jax.random.normal(k3, (Cout, Cout, 3, 3), jnp.float32) * 0.05
    b2 = jax.random.normal(k4, (Cout,), jnp.float32) * 0.05

    out = double_conv(x, w1, b1, w2, b2)
    out = jax.block_until_ready(out)

    assert out.shape == (B, Cout, H, W), out.shape
    assert bool(jnp.all(jnp.isfinite(out)))

    ref = ref_double_conv(x, w1, b1, w2, b2)
    max_err = float(jnp.max(jnp.abs(out - ref)))
    assert max_err < 5e-2, max_err      # bf16 MXU inputs, f32 accumulation

    print("KERNEL_OK")
</pallas_src>

<mosaic_0001>
module attributes {stable_mosaic.version = 11 : i64} {
  func.func @_double_conv_kernel(%arg0: i32, %arg1: memref<1x16x640xbf16, #tpu.memory_space<vmem>>, %arg2: memref<32x144xbf16, #tpu.memory_space<vmem>>, %arg3: memref<32x1xf32, #tpu.memory_space<vmem>>, %arg4: memref<32x288xbf16, #tpu.memory_space<vmem>>, %arg5: memref<32x1xf32, #tpu.memory_space<vmem>>, %arg6: memref<1x384xf32, #tpu.memory_space<vmem>>, %arg7: memref<1x32x384xf32, #tpu.memory_space<vmem>>, %arg8: memref<144x384xbf16, #tpu.memory_space<vmem>>, %arg9: memref<32x640xbf16, #tpu.memory_space<vmem>>, %arg10: memref<288x384xbf16, #tpu.memory_space<vmem>>) attributes {dimension_semantics = [#tpu.dimension_semantics<parallel>], iteration_bounds = array<i64: 2>, scalar_prefetch = 0 : i64, scratch_operands = 3 : i64, tpu.core_type = #tpu.core_type<tc>, window_params = [{transform_indices = @transform_0, window_bounds = array<i64: 1, 16, 640>}, {pipeline_mode = #tpu.pipeline_mode<synchronous>, transform_indices = @transform_1, window_bounds = array<i64: 32, 144>}, {pipeline_mode = #tpu.pipeline_mode<synchronous>, transform_indices = @transform_2, window_bounds = array<i64: 32, 1>}, {pipeline_mode = #tpu.pipeline_mode<synchronous>, transform_indices = @transform_3, window_bounds = array<i64: 32, 288>}, {pipeline_mode = #tpu.pipeline_mode<synchronous>, transform_indices = @transform_4, window_bounds = array<i64: 32, 1>}, {pipeline_mode = #tpu.pipeline_mode<synchronous>, transform_indices = @transform_5, window_bounds = array<i64: 1, 384>}, {transform_indices = @transform_6, window_bounds = array<i64: 1, 32, 384>}]} {
    %c0 = arith.constant 0 : index
    %c0_0 = arith.constant 0 : index
    %0 = vector.load %arg6[%c0, %c0_0] : memref<1x384xf32, #tpu.memory_space<vmem>>, vector<1x384xf32>
    %c0_1 = arith.constant 0 : index
    %c0_2 = arith.constant 0 : index
    %c109 = arith.constant 109 : index
    %1 = vector.load %arg1[%c0_1, %c0_2, %c109] : memref<1x16x640xbf16, #tpu.memory_space<vmem>>, vector<1x16x384xbf16>
    %2 = vector.shape_cast %1 : vector<1x16x384xbf16> to vector<16x384xbf16>
    %c0_3 = arith.constant 0 : index
    %c0_4 = arith.constant 0 : index
    %3 = vector.load %arg8[%c0_3, %c0_4] : memref<144x384xbf16, #tpu.memory_space<vmem>>, vector<16x384xbf16>
    tpu.vector_store %arg8[%c0_3, %c0_4], %2 {strides = array<i32>} : memref<144x384xbf16, #tpu.memory_space<vmem>>, vector<16x384xbf16>,
    %c0_5 = arith.constant 0 : index
    %c0_6 = arith.constant 0 : index
    %c110 = arith.constant 110 : index
    %4 = vector.load %arg1[%c0_5, %c0_6, %c110] : memref<1x16x640xbf16, #tpu.memory_space<vmem>>, vector<1x16x384xbf16>
    %5 = vector.shape_cast %4 : vector<1x16x384xbf16> to vector<16x384xbf16>
    %c16 = arith.constant 16 : index
    %c0_7 = arith.constant 0 : index
    %6 = vector.load %arg8[%c16, %c0_7] : memref<144x384xbf16, #tpu.memory_space<vmem>>, vector<16x384xbf16>
    tpu.vector_store %arg8[%c16, %c0_7], %5 {strides = array<i32>} : memref<144x384xbf16, #tpu.memory_space<vmem>>, vector<16x384xbf16>,
    %c0_8 = arith.constant 0 : index
    %c0_9 = arith.constant 0 : index
    %c111 = arith.constant 111 : index
    %7 = vector.load %arg1[%c0_8, %c0_9, %c111] : memref<1x16x640xbf16, #tpu.memory_space<vmem>>, vector<1x16x384xbf16>
    %8 = vector.shape_cast %7 : vector<1x16x384xbf16> to vector<16x384xbf16>
    %c32 = arith.constant 32 : index
    %c0_10 = arith.constant 0 : index
    %9 = vector.load %arg8[%c32, %c0_10] : memref<144x384xbf16, #tpu.memory_space<vmem>>, vector<16x384xbf16>
    tpu.vector_store %arg8[%c32, %c0_10], %8 {strides = array<i32>} : memref<144x384xbf16, #tpu.memory_space<vmem>>, vector<16x384xbf16>,
    %c0_11 = arith.constant 0 : index
    %c0_12 = arith.constant 0 : index
    %c127 = arith.constant 127 : index
    %10 = vector.load %arg1[%c0_11, %c0_12, %c127] : memref<1x16x640xbf16, #tpu.memory_space<vmem>>, vector<1x16x384xbf16>
    %11 = vector.shape_cast %10 : vector<1x16x384xbf16> to vector<16x384xbf16>
    %c48 = arith.constant 48 : index
    %c0_13 = arith.constant 0 : index
    %12 = vector.load %arg8[%c48, %c0_13] : memref<144x384xbf16, #tpu.memory_space<vmem>>, vector<16x384xbf16>
    tpu.vector_store %arg8[%c48, %c0_13], %11 {strides = array<i32>} : memref<144x384xbf16, #tpu.memory_space<vmem>>, vector<16x384xbf16>,
    %c0_14 = arith.constant 0 : index
    %c0_15 = arith.constant 0 : index
    %c128 = arith.constant 128 : index
    %13 = vector.load %arg1[%c0_14, %c0_15, %c128] : memref<1x16x640xbf16, #tpu.memory_space<vmem>>, vector<1x16x384xbf16>
    %14 = vector.shape_cast %13 : vector<1x16x384xbf16> to vector<16x384xbf16>
    %c64 = arith.constant 64 : index
    %c0_16 = arith.constant 0 : index
    %15 = vector.load %arg8[%c64, %c0_16] : memref<144x384xbf16, #tpu.memory_space<vmem>>, vector<16x384xbf16>
    tpu.vector_store %arg8[%c64, %c0_16], %14 {strides = array<i32>} : memref<144x384xbf16, #tpu.memory_space<vmem>>, vector<16x384xbf16>,
    %c0_17 = arith.constant 0 : index
    %c0_18 = arith.constant 0 : index
    %c129 = arith.constant 129 : index
    %16 = vector.load %arg1[%c0_17, %c0_18, %c129] : memref<1x16x640xbf16, #tpu.memory_space<vmem>>, vector<1x16x384xbf16>
    %17 = vector.shape_cast %16 : vector<1x16x384xbf16> to vector<16x384xbf16>
    %c80 = arith.constant 80 : index
    %c0_19 = arith.constant 0 : index
    %18 = vector.load %arg8[%c80, %c0_19] : memref<144x384xbf16, #tpu.memory_space<vmem>>, vector<16x384xbf16>
    tpu.vector_store %arg8[%c80, %c0_19], %17 {strides = array<i32>} : memref<144x384xbf16, #tpu.memory_space<vmem>>, vector<16x384xbf16>,
    %c0_20 = arith.constant 0 : index
    %c0_21 = arith.constant 0 : index
    %c145 = arith.constant 145 : index
    %19 = vector.load %arg1[%c0_20, %c0_21, %c145] : memref<1x16x640xbf16, #tpu.memory_space<vmem>>, vector<1x16x384xbf16>
    %20 = vector.shape_cast %19 : vector<1x16x384xbf16> to vector<16x384xbf16>
    %c96 = arith.constant 96 : index
    %c0_22 = arith.constant 0 : index
    %21 = vector.load %arg8[%c96, %c0_22] : memref<144x384xbf16, #tpu.memory_space<vmem>>, vector<16x384xbf16>
    tpu.vector_store %arg8[%c96, %c0_22], %20 {strides = array<i32>} : memref<144x384xbf16, #tpu.memory_space<vmem>>, vector<16x384xbf16>,
    %c0_23 = arith.constant 0 : index
    %c0_24 = arith.constant 0 : index
    %c146 = arith.constant 146 : index
    %22 = vector.load %arg1[%c0_23, %c0_24, %c146] : memref<1x16x640xbf16, #tpu.memory_space<vmem>>, vector<1x16x384xbf16>
    %23 = vector.shape_cast %22 : vector<1x16x384xbf16> to vector<16x384xbf16>
    %c112 = arith.constant 112 : index
    %c0_25 = arith.constant 0 : index
    %24 = vector.load %arg8[%c112, %c0_25] : memref<144x384xbf16, #tpu.memory_space<vmem>>, vector<16x384xbf16>
    tpu.vector_store %arg8[%c112, %c0_25], %23 {strides = array<i32>} : memref<144x384xbf16, #tpu.memory_space<vmem>>, vector<16x384xbf16>,
    %c0_26 = arith.constant 0 : index
    %c0_27 = arith.constant 0 : index
    %c147 = arith.constant 147 : index
    %25 = vector.load %arg1[%c0_26, %c0_27, %c147] : memref<1x16x640xbf16, #tpu.memory_space<vmem>>, vector<1x16x384xbf16>
    %26 = vector.shape_cast %25 : vector<1x16x384xbf16> to vector<16x384xbf16>
    %c128_28 = arith.constant 128 : index
    %c0_29 = arith.constant 0 : index
    %27 = vector.load %arg8[%c128_28, %c0_29] : memref<144x384xbf16, #tpu.memory_space<vmem>>, vector<16x384xbf16>
    tpu.vector_store %arg8[%c128_28, %c0_29], %26 {strides = array<i32>} : memref<144x384xbf16, #tpu.memory_space<vmem>>, vector<16x384xbf16>,
    %c0_30 = arith.constant 0 : index
    %c0_31 = arith.constant 0 : index
    %28 = vector.load %arg2[%c0_30, %c0_31] : memref<32x144xbf16, #tpu.memory_space<vmem>>, vector<32x144xbf16>
    %c0_32 = arith.constant 0 : index
    %c0_33 = arith.constant 0 : index
    %29 = vector.load %arg8[%c0_32, %c0_33] : memref<144x384xbf16, #tpu.memory_space<vmem>>, vector<144x384xbf16>
    %cst = arith.constant dense<0.000000e+00> : vector<32x384xf32>
    %30 = tpu.matmul %28, %29, %cst {dimension_numbers = #tpu.dot_dimension_numbers<[1], [0], [0], [1], [0, 0, 1, 1], [], []>} : vector<32x144xbf16>, vector<144x384xbf16>, vector<32x384xf32> -> vector<32x384xf32>
    %c0_34 = arith.constant 0 : index
    %c0_35 = arith.constant 0 : index
    %31 = vector.load %arg3[%c0_34, %c0_35] : memref<32x1xf32, #tpu.memory_space<vmem>>, vector<32x1xf32>
    %32 = vector.broadcast %31 : vector<32x1xf32> to vector<32x384xf32>
    %33 = arith.addf %30, %32 : vector<32x384xf32>
    %cst_36 = arith.constant 0.000000e+00 : f32
    %34 = vector.broadcast %cst_36 : f32 to vector<32x384xf32>
    %35 = arith.maximumf %33, %34 : vector<32x384xf32>
    %36 = vector.broadcast %0 : vector<1x384xf32> to vector<32x384xf32>
    %37 = arith.mulf %35, %36 : vector<32x384xf32>
    %cst_37 = arith.constant 0.000000e+00 : bf16
    %38 = vector.broadcast %cst_37 : bf16 to vector<32x128xbf16>
    %c0_38 = arith.constant 0 : index
    %c0_39 = arith.constant 0 : index
    %39 = vector.load %arg9[%c0_38, %c0_39] : memref<32x640xbf16, #tpu.memory_space<vmem>>, vector<32x128xbf16>
    tpu.vector_store %arg9[%c0_38, %c0_39], %38 {strides = array<i32>} : memref<32x640xbf16, #tpu.memory_space<vmem>>, vector<32x128xbf16>,
    %c0_40 = arith.constant 0 : index
    %c512 = arith.constant 512 : index
    %40 = vector.load %arg9[%c0_40, %c512] : memref<32x640xbf16, #tpu.memory_space<vmem>>, vector<32x128xbf16>
    tpu.vector_store %arg9[%c0_40, %c512], %38 {strides = array<i32>} : memref<32x640xbf16, #tpu.memory_space<vmem>>, vector<32x128xbf16>,
    %41 = arith.truncf %37 : vector<32x384xf32> to vector<32x384xbf16>
    %c0_41 = arith.constant 0 : index
    %c128_42 = arith.constant 128 : index
    %42 = vector.load %arg9[%c0_41, %c128_42] : memref<32x640xbf16, #tpu.memory_space<vmem>>, vector<32x384xbf16>
    tpu.vector_store %arg9[%c0_41, %c128_42], %41 {strides = array<i32>} : memref<32x640xbf16, #tpu.memory_space<vmem>>, vector<32x384xbf16>,
    %c0_43 = arith.constant 0 : index
    %c109_44 = arith.constant 109 : index
    %43 = vector.load %arg9[%c0_43, %c109_44] : memref<32x640xbf16, #tpu.memory_space<vmem>>, vector<32x384xbf16>
    %c0_45 = arith.constant 0 : index
    %c0_46 = arith.constant 0 : index
    %44 = vector.load %arg10[%c0_45, %c0_46] : memref<288x384xbf16, #tpu.memory_space<vmem>>, vector<32x384xbf16>
    tpu.vector_store %arg10[%c0_45, %c0_46], %43 {strides = array<i32>} : memref<288x384xbf16, #tpu.memory_space<vmem>>, vector<32x384xbf16>,
    %c0_47 = arith.constant 0 : index
    %c110_48 = arith.constant 110 : index
    %45 = vector.load %arg9[%c0_47, %c110_48] : memref<32x640xbf16, #tpu.memory_space<vmem>>, vector<32x384xbf16>
    %c32_49 = arith.constant 32 : index
    %c0_50 = arith.constant 0 : index
    %46 = vector.load %arg10[%c32_49, %c0_50] : memref<288x384xbf16, #tpu.memory_space<vmem>>, vector<32x384xbf16>
    tpu.vector_store %arg10[%c32_49, %c0_50], %45 {strides = array<i32>} : memref<288x384xbf16, #tpu.memory_space<vmem>>, vector<32x384xbf16>,
    %c0_51 = arith.constant 0 : index
    %c111_52 = arith.constant 111 : index
    %47 = vector.load %arg9[%c0_51, %c111_52] : memref<32x640xbf16, #tpu.memory_space<vmem>>, vector<32x384xbf16>
    %c64_53 = arith.constant 64 : index
    %c0_54 = arith.constant 0 : index
    %48 = vector.load %arg10[%c64_53, %c0_54] : memref<288x384xbf16, #tpu.memory_space<vmem>>, vector<32x384xbf16>
    tpu.vector_store %arg10[%c64_53, %c0_54], %47 {strides = array<i32>} : memref<288x384xbf16, #tpu.memory_space<vmem>>, vector<32x384xbf16>,
    %c0_55 = arith.constant 0 : index
    %c127_56 = arith.constant 127 : index
    %49 = vector.load %arg9[%c0_55, %c127_56] : memref<32x640xbf16, #tpu.memory_space<vmem>>, vector<32x384xbf16>
    %c96_57 = arith.constant 96 : index
    %c0_58 = arith.constant 0 : index
    %50 = vector.load %arg10[%c96_57, %c0_58] : memref<288x384xbf16, #tpu.memory_space<vmem>>, vector<32x384xbf16>
    tpu.vector_store %arg10[%c96_57, %c0_58], %49 {strides = array<i32>} : memref<288x384xbf16, #tpu.memory_space<vmem>>, vector<32x384xbf16>,
    %c0_59 = arith.constant 0 : index
    %c128_60 = arith.constant 128 : index
    %51 = vector.load %arg9[%c0_59, %c128_60] : memref<32x640xbf16, #tpu.memory_space<vmem>>, vector<32x384xbf16>
    %c128_61 = arith.constant 128 : index
    %c0_62 = arith.constant 0 : index
    %52 = vector.load %arg10[%c128_61, %c0_62] : memref<288x384xbf16, #tpu.memory_space<vmem>>, vector<32x384xbf16>
    tpu.vector_store %arg10[%c128_61, %c0_62], %51 {strides = array<i32>} : memref<288x384xbf16, #tpu.memory_space<vmem>>, vector<32x384xbf16>,
    %c0_63 = arith.constant 0 : index
    %c129_64 = arith.constant 129 : index
    %53 = vector.load %arg9[%c0_63, %c129_64] : memref<32x640xbf16, #tpu.memory_space<vmem>>, vector<32x384xbf16>
    %c160 = arith.constant 160 : index
    %c0_65 = arith.constant 0 : index
    %54 = vector.load %arg10[%c160, %c0_65] : memref<288x384xbf16, #tpu.memory_space<vmem>>, vector<32x384xbf16>
    tpu.vector_store %arg10[%c160, %c0_65], %53 {strides = array<i32>} : memref<288x384xbf16, #tpu.memory_space<vmem>>, vector<32x384xbf16>,
    %c0_66 = arith.constant 0 : index
    %c145_67 = arith.constant 145 : index
    %55 = vector.load %arg9[%c0_66, %c145_67] : memref<32x640xbf16, #tpu.memory_space<vmem>>, vector<32x384xbf16>
    %c192 = arith.constant 192 : index
    %c0_68 = arith.constant 0 : index
    %56 = vector.load %arg10[%c192, %c0_68] : memref<288x384xbf16, #tpu.memory_space<vmem>>, vector<32x384xbf16>
    tpu.vector_store %arg10[%c192, %c0_68], %55 {strides = array<i32>} : memref<288x384xbf16, #tpu.memory_space<vmem>>, vector<32x384xbf16>,
    %c0_69 = arith.constant 0 : index
    %c146_70 = arith.constant 146 : index
    %57 = vector.load %arg9[%c0_69, %c146_70] : memref<32x640xbf16, #tpu.memory_space<vmem>>, vector<32x384xbf16>
    %c224 = arith.constant 224 : index
    %c0_71 = arith.constant 0 : index
    %58 = vector.load %arg10[%c224, %c0_71] : memref<288x384xbf16, #tpu.memory_space<vmem>>, vector<32x384xbf16>
    tpu.vector_store %arg10[%c224, %c0_71], %57 {strides = array<i32>} : memref<288x384xbf16, #tpu.memory_space<vmem>>, vector<32x384xbf16>,
    %c0_72 = arith.constant 0 : index
    %c147_73 = arith.constant 147 : index
    %59 = vector.load %arg9[%c0_72, %c147_73] : memref<32x640xbf16, #tpu.memory_space<vmem>>, vector<32x384xbf16>
    %c256 = arith.constant 256 : index
    %c0_74 = arith.constant 0 : index
    %60 = vector.load %arg10[%c256, %c0_74] : memref<288x384xbf16, #tpu.memory_space<vmem>>, vector<32x384xbf16>
    tpu.vector_store %arg10[%c256, %c0_74], %59 {strides = array<i32>} : memref<288x384xbf16, #tpu.memory_space<vmem>>, vector<32x384xbf16>,
    %c0_75 = arith.constant 0 : index
    %c0_76 = arith.constant 0 : index
    %61 = vector.load %arg4[%c0_75, %c0_76] : memref<32x288xbf16, #tpu.memory_space<vmem>>, vector<32x288xbf16>
    %c0_77 = arith.constant 0 : index
    %c0_78 = arith.constant 0 : index
    %62 = vector.load %arg10[%c0_77, %c0_78] : memref<288x384xbf16, #tpu.memory_space<vmem>>, vector<288x384xbf16>
    %cst_79 = arith.constant dense<0.000000e+00> : vector<32x384xf32>
    %63 = tpu.matmul %61, %62, %cst_79 {dimension_numbers = #tpu.dot_dimension_numbers<[1], [0], [0], [1], [0, 0, 1, 1], [], []>} : vector<32x288xbf16>, vector<288x384xbf16>, vector<32x384xf32> -> vector<32x384xf32>
    %c0_80 = arith.constant 0 : index
    %c0_81 = arith.constant 0 : index
    %64 = vector.load %arg5[%c0_80, %c0_81] : memref<32x1xf32, #tpu.memory_space<vmem>>, vector<32x1xf32>
    %65 = vector.broadcast %64 : vector<32x1xf32> to vector<32x384xf32>
    %66 = arith.addf %63, %65 : vector<32x384xf32>
    %cst_82 = arith.constant 0.000000e+00 : f32
    %67 = vector.broadcast %cst_82 : f32 to vector<32x384xf32>
    %68 = arith.maximumf %66, %67 : vector<32x384xf32>
    %c0_83 = arith.constant 0 : index
    %c0_84 = arith.constant 0 : index
    %c0_85 = arith.constant 0 : index
    %69 = vector.load %arg7[%c0_83, %c0_84, %c0_85] : memref<1x32x384xf32, #tpu.memory_space<vmem>>, vector<1x32x384xf32>
    %70 = vector.shape_cast %69 : vector<1x32x384xf32> to vector<32x384xf32>
    %71 = vector.shape_cast %68 : vector<32x384xf32> to vector<1x32x384xf32>
    tpu.vector_store %arg7[%c0_83, %c0_84, %c0_85], %71 {strides = array<i32>} : memref<1x32x384xf32, #tpu.memory_space<vmem>>, vector<1x32x384xf32>,
    return
  }
  func.func @transform_0(%arg0: i32) -> (i32, i32, i32) {
    %c0_i32 = arith.constant 0 : i32
    %c0_i32_0 = arith.constant 0 : i32
    %c0_i32_1 = arith.constant 0 : i32
    return %arg0, %c0_i32, %c0_i32_0 : i32, i32, i32
  }
  func.func @transform_1(%arg0: i32) -> (i32, i32) {
    %c0_i32 = arith.constant 0 : i32
    %c0_i32_0 = arith.constant 0 : i32
    %c0_i32_1 = arith.constant 0 : i32
    return %c0_i32, %c0_i32_0 : i32, i32
  }
  func.func @transform_2(%arg0: i32) -> (i32, i32) {
    %c0_i32 = arith.constant 0 : i32
    %c0_i32_0 = arith.constant 0 : i32
    %c0_i32_1 = arith.constant 0 : i32
    return %c0_i32, %c0_i32_0 : i32, i32
  }
  func.func @transform_3(%arg0: i32) -> (i32, i32) {
    %c0_i32 = arith.constant 0 : i32
    %c0_i32_0 = arith.constant 0 : i32
    %c0_i32_1 = arith.constant 0 : i32
    return %c0_i32, %c0_i32_0 : i32, i32
  }
  func.func @transform_4(%arg0: i32) -> (i32, i32) {
    %c0_i32 = arith.constant 0 : i32
    %c0_i32_0 = arith.constant 0 : i32
    %c0_i32_1 = arith.constant 0 : i32
    return %c0_i32, %c0_i32_0 : i32, i32
  }
  func.func @transform_5(%arg0: i32) -> (i32, i32) {
    %c0_i32 = arith.constant 0 : i32
    %c0_i32_0 = arith.constant 0 : i32
    %c0_i32_1 = arith.constant 0 : i32
    return %c0_i32, %c0_i32_0 : i32, i32
  }
  func.func @transform_6(%arg0: i32) -> (i32, i32, i32) {
    %c0_i32 = arith.constant 0 : i32
    %c0_i32_0 = arith.constant 0 : i32
    %c0_i32_1 = arith.constant 0 : i32
    return %arg0, %c0_i32, %c0_i32_0 : i32, i32, i32
  }
}

</mosaic_0001>

<llo_original>
// kernel: tpu_custom_call.1
$region0: #{tpu_custom_call.1}
  #allocation0 [shape = 'u32[]', space=smem, size = 0x4, offset = 0x4, fixed_abs, tag = 'smem constant byte address 0x4 - core index']
  #allocation1 [shape = 'u32[72,128]{1,0:T(1,128)}', space=vmem, size = 0x9000, scoped, tag = 'internal scratch']
  #allocation2 [shape = 'bf16[144,384]{1,0:T(8,128)(2,1)}', space=vmem, size = 0x1b000, scoped, tag = 'scratch operand']
  #allocation3 [shape = 'bf16[32,640]{1,0:T(8,128)(2,1)}', space=vmem, size = 0xa000, scoped, tag = 'scratch operand']
  #allocation4 [shape = 'bf16[288,384]{1,0:T(8,128)(2,1)}', space=vmem, size = 0x36000, scoped, tag = 'scratch operand']
  %s0 = inlined_call_operand.hbm [shape: bf16[2,16,640], index: 0, kind: input, shape index: {}]
  %s1 = inlined_call_operand.hbm [shape: bf16[32,144], index: 1, kind: input, shape index: {}]
  %s2 = inlined_call_operand.vmem [shape: f32[32,1], index: 2, kind: input, shape index: {}]
  %s3 = inlined_call_operand.vmem [shape: bf16[32,288], index: 3, kind: input, shape index: {}]
  %s4 = inlined_call_operand.vmem [shape: f32[32,1], index: 4, kind: input, shape index: {}]
  %s5 = inlined_call_operand.vmem [shape: f32[1,384], index: 5, kind: input, shape index: {}]
  %s6 = inlined_call_operand.hbm [shape: f32[2,32,384], index: 6, kind: output, shape index: {}]
  %s7 = sld [smem:[#allocation0]]
  $region65: #{tpu_custom_call.1} parent=0
    _
  %s9 = ssub.s32 1, %s7
  %s10 = scalar_select 0, %s9, %s7
  $region1: #{tpu_custom_call.1} parent=0
    #allocation5 [shape = 'u8[40960]{0}', space=vmem, size = 0xa000, scoped, tag = 'input window, operand 0']
    #allocation6 [shape = 's32[2]{0}', space=sflag, size = 0x8, scoped, tag = 'scoped memory for tpu_custom_call.1']
    #allocation7 [shape = 's32[2]{0}', space=sflag, size = 0x8, scoped, tag = 'scoped memory for tpu_custom_call.1']
    #allocation8 [shape = 'u8[16384]{0}', space=vmem, size = 0x4000, scoped, tag = 'input window, operand 1, single buffered']
    #allocation9 [shape = 's32[1]{0}', space=sflag, size = 0x4, scoped, tag = 'scoped memory for tpu_custom_call.1']
    #allocation10 [shape = 'u8[98304]{0}', space=vmem, size = 0x18000, scoped, tag = 'output window, operand 0']
    %11 = vsyncpa [#allocation6], 0
    %s12 = scalar_lea.sflag [#allocation6], 1
    %13 = vsyncpa %s12, 0
    %14 = vsyncpa [#allocation9], 0
    %15 = vsyncpa [#allocation7], 0
    %s16 = scalar_lea.sflag [#allocation7], 1
    %17 = vsyncpa %s16, 0
    loop: start=0, step=1, limit=4
    $region2: #{tpu_custom_call.1} parent=1 // loop_pre_header
      _
    $region3: #{tpu_custom_call.1} parent=1 // loop_header
      %s19 = sphi 0, %s23
      %p20 = scmp.ge.s32.totalorder %s19, 4
      %s29 = sphi 0, %s31
      %s32 = sphi 0, %s29
      %s33 = sphi 0, %s32
      %s49 = sphi 0, %s33
      %s53 = sphi 0, %s53
      %s55 = sphi 0, %s53
      %s56 = sphi 0, %s55
      %s70 = sphi 0, %s56
      %s74 = sphi 0, %s74
      %s76 = sphi 0, %s74
      %s77 = sphi 0, %s76
      %s91 = sphi 0, %s77
      %s95 = sphi 0, %s95
      %s97 = sphi 0, %s95
      %s98 = sphi 0, %s97
      %s112 = sphi 0, %s98
      %s116 = sphi 0, %s116
      %s118 = sphi 0, %s116
      %s119 = sphi 0, %s118
      %s133 = sphi 0, %s119
      %s137 = sphi 0, %s137
      %s139 = sphi 0, %s137
      %s140 = sphi 0, %s139
      %s154 = sphi 0, %s140
      %s160 = sphi 0, %s162
      %s163 = sphi 0, %s160
      %s164 = sphi 0, %s163
      %s180 = sphi 0, %s164
    $region4: #{tpu_custom_call.1} parent=1 // loop_header_branch
      %22 = sbr.rel (%p20) target = $region8
    $region5: #{tpu_custom_call.1} parent=1 // loop_body
      %s24 = ssub.s32 %s19, 1
      %s25 = ssub.s32 %s19, 2
      %s26 = sadd.s32 %s19, 1
      %s27 = ssub.s32 %s19, %s26
      %p28 = scmp.eq.s32.totalorder %s27, 0
      %s30 = sadd.s32 %s29, 1
      %s31 = scalar_select %p28, %s29, %s30
      %p34 = pneg %p28
      %p35 = scmp.eq.s32.totalorder %s19, 1
      %p36 = por %p34, %p35
      %p37 = scmp.ne.s32.totalorder %s29, %s32
      %p38 = scmp.eq.s32.totalorder %s19, 0
      %p39 = por %p37, %p38
      %p40 = scmp.ne.s32.totalorder %s29, %s32
      %p41 = scmp.eq.s32.totalorder %s24, 1
      %p42 = por %p40, %p41
      %p43 = scmp.ne.s32.totalorder %s32, %s33
      %p44 = scmp.eq.s32.totalorder %s24, 0
      %p45 = por %p43, %p44
      %p46 = scmp.ne.s32.totalorder %s32, %s33
      %p47 = scmp.eq.s32.totalorder %s25, 1
      %p48 = por %p46, %p47
      %p50 = scmp.ne.s32.totalorder %s33, %s49
      %p51 = scmp.eq.s32.totalorder %s25, 0
      %p52 = por %p50, %p51
      %s54 = sadd.s32 %s53, 1
      %p57 = scmp.eq.s32.totalorder %s19, 1
      %p58 = scmp.ne.s32.totalorder %s53, %s55
      %p59 = scmp.eq.s32.totalorder %s19, 0
      %p60 = por %p58, %p59
      %p61 = scmp.ne.s32.totalorder %s53, %s55
      %p62 = scmp.eq.s32.totalorder %s24, 1
      %p63 = por %p61, %p62
      %p64 = scmp.ne.s32.totalorder %s55, %s56
      %p65 = scmp.eq.s32.totalorder %s24, 0
      %p66 = por %p64, %p65
      %p67 = scmp.ne.s32.totalorder %s55, %s56
      %p68 = scmp.eq.s32.totalorder %s25, 1
      %p69 = por %p67, %p68
      %p71 = scmp.ne.s32.totalorder %s56, %s70
      %p72 = scmp.eq.s32.totalorder %s25, 0
      %p73 = por %p71, %p72
      %s75 = sadd.s32 %s74, 1
      %p78 = scmp.eq.s32.totalorder %s19, 1
      %p79 = scmp.ne.s32.totalorder %s74, %s76
      %p80 = scmp.eq.s32.totalorder %s19, 0
      %p81 = por %p79, %p80
      %p82 = scmp.ne.s32.totalorder %s74, %s76
      %p83 = scmp.eq.s32.totalorder %s24, 1
      %p84 = por %p82, %p83
      %p85 = scmp.ne.s32.totalorder %s76, %s77
      %p86 = scmp.eq.s32.totalorder %s24, 0
      %p87 = por %p85, %p86
      %p88 = scmp.ne.s32.totalorder %s76, %s77
      %p89 = scmp.eq.s32.totalorder %s25, 1
      %p90 = por %p88, %p89
      %p92 = scmp.ne.s32.totalorder %s77, %s91
      %p93 = scmp.eq.s32.totalorder %s25, 0
      %p94 = por %p92, %p93
      %s96 = sadd.s32 %s95, 1
      %p99 = scmp.eq.s32.totalorder %s19, 1
      %p100 = scmp.ne.s32.totalorder %s95, %s97
      %p101 = scmp.eq.s32.totalorder %s19, 0
      %p102 = por %p100, %p101
      %p103 = scmp.ne.s32.totalorder %s95, %s97
      %p104 = scmp.eq.s32.totalorder %s24, 1
      %p105 = por %p103, %p104
      %p106 = scmp.ne.s32.totalorder %s97, %s98
      %p107 = scmp.eq.s32.totalorder %s24, 0
      %p108 = por %p106, %p107
      %p109 = scmp.ne.s32.totalorder %s97, %s98
      %p110 = scmp.eq.s32.totalorder %s25, 1
      %p111 = por %p109, %p110
      %p113 = scmp.ne.s32.totalorder %s98, %s112
      %p114 = scmp.eq.s32.totalorder %s25, 0
      %p115 = por %p113, %p114
      %s117 = sadd.s32 %s116, 1
      %p120 = scmp.eq.s32.totalorder %s19, 1
      %p121 = scmp.ne.s32.totalorder %s116, %s118
      %p122 = scmp.eq.s32.totalorder %s19, 0
      %p123 = por %p121, %p122
      %p124 = scmp.ne.s32.totalorder %s116, %s118
      %p125 = scmp.eq.s32.totalorder %s24, 1
      %p126 = por %p124, %p125
      %p127 = scmp.ne.s32.totalorder %s118, %s119
      %p128 = scmp.eq.s32.totalorder %s24, 0
      %p129 = por %p127, %p128
      %p130 = scmp.ne.s32.totalorder %s118, %s119
      %p131 = scmp.eq.s32.totalorder %s25, 1
      %p132 = por %p130, %p131
      %p134 = scmp.ne.s32.totalorder %s119, %s133
      %p135 = scmp.eq.s32.totalorder %s25, 0
      %p136 = por %p134, %p135
      %s138 = sadd.s32 %s137, 1
      %p141 = scmp.eq.s32.totalorder %s19, 1
      %p142 = scmp.ne.s32.totalorder %s137, %s139
      %p143 = scmp.eq.s32.totalorder %s19, 0
      %p144 = por %p142, %p143
      %p145 = scmp.ne.s32.totalorder %s137, %s139
      %p146 = scmp.eq.s32.totalorder %s24, 1
      %p147 = por %p145, %p146
      %p148 = scmp.ne.s32.totalorder %s139, %s140
      %p149 = scmp.eq.s32.totalorder %s24, 0
      %p150 = por %p148, %p149
      %p151 = scmp.ne.s32.totalorder %s139, %s140
      %p152 = scmp.eq.s32.totalorder %s25, 1
      %p153 = por %p151, %p152
      %p155 = scmp.ne.s32.totalorder %s140, %s154
      %p156 = scmp.eq.s32.totalorder %s25, 0
      %p157 = por %p155, %p156
      %s158 = ssub.s32 %s19, %s26
      %p159 = scmp.eq.s32.totalorder %s158, 0
      %s161 = sadd.s32 %s160, 1
      %s162 = scalar_select %p159, %s160, %s161
      %p165 = pneg %p159
      %p166 = scmp.eq.s32.totalorder %s19, 1
      %p167 = por %p165, %p166
      %p168 = scmp.ne.s32.totalorder %s160, %s163
      %p169 = scmp.eq.s32.totalorder %s19, 0
      %p170 = por %p168, %p169
      %p171 = scmp.ne.s32.totalorder %s160, %s163
      %p172 = scmp.eq.s32.totalorder %s24, 1
      %p173 = por %p171, %p172
      %p174 = scmp.ne.s32.totalorder %s163, %s164
      %p175 = scmp.eq.s32.totalorder %s24, 0
      %p176 = por %p174, %p175
      %p177 = scmp.ne.s32.totalorder %s163, %s164
      %p178 = scmp.eq.s32.totalorder %s25, 1
      %p179 = por %p177, %p178
      %p181 = scmp.ne.s32.totalorder %s164, %s180
      %p182 = scmp.eq.s32.totalorder %s25, 0
      %p183 = por %p181, %p182
      %p184 = scmp.le.s32.totalorder 1, %s19
      %p185 = scmp.lt.s32.totalorder %s19, 3
      %p186 = pnand %p184, %p185
      %p187 = pneg %p186
      // Predicated region
      $region9: #{tpu_custom_call.1} parent=5 // pred_check
        _
      $region10: #{tpu_custom_call.1} parent=5 // pred_check_branch
        %189 = sbr.rel (%p186) target = $region12
      $region11: #{tpu_custom_call.1} parent=5 // pred_region
        %s190 = ssub.s32 %s19, 1
        // Predicated region
        $region13: #{tpu_custom_call.1} parent=11 // pred_check
          %p191 = pneg %p66
        $region14: #{tpu_custom_call.1} parent=11 // pred_check_branch
          %193 = sbr.rel (%p191) target = $region16
        $region15: #{tpu_custom_call.1} parent=11 // pred_region
          %195 = vsyncadd [#allocation9], 0
          %s196 = sshll.u32 %s1, 4
          %s197 = int_to_ptr.hbm [resolvable:$true] %s196
          %s198 = sshll.u32 [#allocation8], 4
          %s199 = int_to_ptr.vmem [resolvable:$true] %s198
          %204 = dma.hbm_to_vmem [thread:$0]  %s197, 512, %s199, [#allocation9], 128, 128, 8
        $region16: #{tpu_custom_call.1} parent=11 // pred_fallthru
          _
        // Predicated region
        $region17: #{tpu_custom_call.1} parent=11 // pred_check
          %p205 = pneg %p87
        $region18: #{tpu_custom_call.1} parent=11 // pred_check_branch
          %207 = sbr.rel (%p205) target = $region20
        $region19: #{tpu_custom_call.1} parent=11 // pred_region
          _
        $region20: #{tpu_custom_call.1} parent=11 // pred_fallthru
          _
        // Predicated region
        $region21: #{tpu_custom_call.1} parent=11 // pred_check
          %p208 = pneg %p108
        $region22: #{tpu_custom_call.1} parent=11 // pred_check_branch
          %210 = sbr.rel (%p208) target = $region24
        $region23: #{tpu_custom_call.1} parent=11 // pred_region
          _
        $region24: #{tpu_custom_call.1} parent=11 // pred_fallthru
          _
        // Predicated region
        $region25: #{tpu_custom_call.1} parent=11 // pred_check
          %p211 = pneg %p129
        $region26: #{tpu_custom_call.1} parent=11 // pred_check_branch
          %213 = sbr.rel (%p211) target = $region28
        $region27: #{tpu_custom_call.1} parent=11 // pred_region
          _
        $region28: #{tpu_custom_call.1} parent=11 // pred_fallthru
          _
        // Predicated region
        $region29: #{tpu_custom_call.1} parent=11 // pred_check
          %p214 = pneg %p150
        $region30: #{tpu_custom_call.1} parent=11 // pred_check_branch
          %216 = sbr.rel (%p214) target = $region32
        $region31: #{tpu_custom_call.1} parent=11 // pred_region
          _
        $region32: #{tpu_custom_call.1} parent=11 // pred_fallthru
          _
      $region12: #{tpu_custom_call.1} parent=5 // pred_fallthru
        _
      %p217 = scmp.lt.s32.totalorder %s19, 2
      // Predicated region
      $region33: #{tpu_custom_call.1} parent=5 // pred_check
        %p218 = pneg %p217
      $region34: #{tpu_custom_call.1} parent=5 // pred_check_branch
        %220 = sbr.rel (%p218) target = $region36
      $region35: #{tpu_custom_call.1} parent=5 // pred_region
        // Predicated region
        $region37: #{tpu_custom_call.1} parent=35 // pred_check
          %p221 = pneg %p39
        $region38: #{tpu_custom_call.1} parent=35 // pred_check_branch
          %223 = sbr.rel (%p221) target = $region40
        $region39: #{tpu_custom_call.1} parent=35 // pred_region
          %s224 = sand.u32 %s29, 1
          %s225 = scalar_lea.sflag [#allocation6], %s224
          %s226 = sand.u32 %s29, 1
          %s227 = smul.addr %s226, 40
          %s228 = scalar_lea.vmem [#allocation5], %s227
          %230 = vsyncadd %s225, 0
          %s231 = smul.addr %s19, 10
          %s232 = smul.addr %s231, 4
          %s233 = scalar_lea.hbm %s0, %s232
          %s234 = sshll.u32 %s233, 4
          %s235 = int_to_ptr.hbm [resolvable:$true] %s234
          %s236 = sshll.u32 %s228, 4
          %s237 = int_to_ptr.vmem [resolvable:$true] %s236
          %242 = dma.hbm_to_vmem [thread:$0]  %s235, 640, %s237, %s225, 320, 320, 20
        $region40: #{tpu_custom_call.1} parent=35 // pred_fallthru
          _
      $region36: #{tpu_custom_call.1} parent=5 // pred_fallthru
        _
      %p243 = scmp.le.s32.totalorder 1, %s19
      %p244 = scmp.lt.s32.totalorder %s19, 3
      %p245 = pnand %p243, %p244
      %p246 = pneg %p245
      // Predicated region
      $region41: #{tpu_custom_call.1} parent=5 // pred_check
        _
      $region42: #{tpu_custom_call.1} parent=5 // pred_check_branch
        %248 = sbr.rel (%p245) target = $region44
      $region43: #{tpu_custom_call.1} parent=5 // pred_region
        %s249 = ssub.s32 %s19, 1
        %s250 = sand.u32 %s32, 1
        %s251 = scalar_lea.sflag [#allocation6], %s250
        %s252 = sand.u32 %s32, 1
        %s253 = smul.addr %s252, 40
        %s254 = scalar_lea.vmem [#allocation5], %s253
        // Predicated region
        $region45: #{tpu_custom_call.1} parent=43 // pred_check
          %p255 = pneg %p45
        $region46: #{tpu_custom_call.1} parent=43 // pred_check_branch
          %257 = sbr.rel (%p255) target = $region48
        $region47: #{tpu_custom_call.1} parent=43 // pred_region
          %259 = dma.done %s251, 640
        $region48: #{tpu_custom_call.1} parent=43 // pred_fallthru
          _
        // Predicated region
        $region49: #{tpu_custom_call.1} parent=43 // pred_check
          %p260 = pneg %p66
        $region50: #{tpu_custom_call.1} parent=43 // pred_check_branch
          %262 = sbr.rel (%p260) target = $region52
        $region51: #{tpu_custom_call.1} parent=43 // pred_region
          %264 = dma.done [#allocation9], 512
        $region52: #{tpu_custom_call.1} parent=43 // pred_fallthru
          _
        %s265 = sand.u32 %s32, 1
        %s266 = scalar_lea.sflag [#allocation6], %s265
        %s267 = sand.u32 %s32, 1
        %s268 = smul.addr %s267, 40
        %s269 = scalar_lea.vmem [#allocation5], %s268
        %p270 = pneg %p45
        %p271 = pneg %p42
        %p272 = pneg %p66
        %p273 = pneg %p63
        %p274 = pneg %p87
        %p275 = pneg %p84
        %p276 = pneg %p108
        %p277 = pneg %p105
        %p278 = pneg %p129
        %p279 = pneg %p126
        %p280 = pneg %p150
        %p281 = pneg %p147
        %p282 = pneg %p176
        %p283 = pneg %p173
        %s284 = sand.u32 %s163, 1
        %s285 = scalar_lea.sflag [#allocation7], %s284
        %s286 = sand.u32 %s163, 1
        %s287 = smul.addr %s286, 96
        %s288 = scalar_lea.vmem [#allocation10], %s287
        %v290 = vld [vmem:[%s5] sm:$0x7]
        %v291 = vld [vmem:[%s254] sm:$0xff]
        %v292 = vld [vmem:[%s254 + $0x8] sm:$0xff]
        %v293 = vld [vmem:[%s254 + $0x14] sm:$0xff]
        %v294 = vld [vmem:[%s254 + $0x1c] sm:$0xff]
        %299 = vrot.lane.b32.xlu0 %v291, 19
        %v300 = vpop.permute.xlu0 %299
        %301 = vrot.lane.b32.xlu0 %v292, 19
        %v302 = vpop.permute.xlu0 %301
        %303 = vrot.lane.b32.xlu0 %v293, 19
        %v304 = vpop.permute.xlu0 %303
        %305 = vrot.lane.b32.xlu0 %v294, 19
        %v306 = vpop.permute.xlu0 %305
        %v307 = vrot.slane %v300, 4
        %v308 = vrot.slane %v302, 4
        %v309 = vrot.slane %v304, 4
        %v310 = vrot.slane %v306, 4
        %vm311 = vcmask 1043456
        %v312 = vsel %vm311, %v307, %v308
        %vm313 = vcmask 154624
        %v314 = vsel %vm313, %v300, %v312
        %v315 = vsel %vm313, %v302, %v308
        %v316 = vsel %vm311, %v309, %v310
        %v317 = vsel %vm313, %v304, %v316
        %v318 = vsel %vm313, %v306, %v310
        %323 = vst [vmem:[#allocation2] sm:$0xff] %v314
        %324 = vst [vmem:[#allocation2 + $0x8] sm:$0xf] %v315
        %325 = vst [vmem:[#allocation2 + $0xc] sm:$0xff] %v317
        %326 = vst [vmem:[#allocation2 + $0x14] sm:$0xf] %v318
        %v327 = vld [vmem:[%s254] sm:$0xff]
        %v328 = vld [vmem:[%s254 + $0x8] sm:$0xff]
        %v329 = vld [vmem:[%s254 + $0x14] sm:$0xff]
        %v330 = vld [vmem:[%s254 + $0x1c] sm:$0xff]
        %335 = vrot.lane.b32.xlu0 %v327, 18
        %v336 = vpop.permute.xlu0 %335
        %337 = vrot.lane.b32.xlu0 %v328, 18
        %v338 = vpop.permute.xlu0 %337
        %339 = vrot.lane.b32.xlu0 %v329, 18
        %v340 = vpop.permute.xlu0 %339
        %341 = vrot.lane.b32.xlu0 %v330, 18
        %v342 = vpop.permute.xlu0 %341
        %v343 = vrot.slane %v336, 4
        %v344 = vrot.slane %v338, 4
        %v345 = vrot.slane %v340, 4
        %v346 = vrot.slane %v342, 4
        %v347 = vsel %vm311, %v343, %v344
        %vm348 = vcmask 146432
        %v349 = vsel %vm348, %v336, %v347
        %v350 = vsel %vm348, %v338, %v344
        %v351 = vsel %vm311, %v345, %v346
        %v352 = vsel %vm348, %v340, %v351
        %v353 = vsel %vm348, %v342, %v346
        %358 = vst [vmem:[#allocation2 + $0x18] sm:$0xff] %v349
        %359 = vst [vmem:[#allocation2 + $0x20] sm:$0xf] %v350
        %360 = vst [vmem:[#allocation2 + $0x24] sm:$0xff] %v352
        %361 = vst [vmem:[#allocation2 + $0x2c] sm:$0xf] %v353
        %v362 = vld [vmem:[%s254] sm:$0xff]
        %v363 = vld [vmem:[%s254 + $0x8] sm:$0xff]
        %v364 = vld [vmem:[%s254 + $0x14] sm:$0xff]
        %v365 = vld [vmem:[%s254 + $0x1c] sm:$0xff]
        %370 = vrot.lane.b32.xlu0 %v362, 17
        %v371 = vpop.permute.xlu0 %370
        %372 = vrot.lane.b32.xlu0 %v363, 17
        %v373 = vpop.permute.xlu0 %372
        %374 = vrot.lane.b32.xlu0 %v364, 17
        %v375 = vpop.permute.xlu0 %374
        %376 = vrot.lane.b32.xlu0 %v365, 17
        %v377 = vpop.permute.xlu0 %376
        %v378 = vrot.slane %v371, 4
        %v379 = vrot.slane %v373, 4
        %v380 = vrot.slane %v375, 4
        %v381 = vrot.slane %v377, 4
        %v382 = vsel %vm311, %v378, %v379
        %vm383 = vcmask 138240
        %v384 = vsel %vm383, %v371, %v382
        %v385 = vsel %vm383, %v373, %v379
        %v386 = vsel %vm311, %v380, %v381
        %v387 = vsel %vm383, %v375, %v386
        %v388 = vsel %vm383, %v377, %v381
        %393 = vst [vmem:[#allocation2 + $0x30] sm:$0xff] %v384
        %394 = vst [vmem:[#allocation2 + $0x38] sm:$0xf] %v385
        %395 = vst [vmem:[#allocation2 + $0x3c] sm:$0xff] %v387
        %396 = vst [vmem:[#allocation2 + $0x44] sm:$0xf] %v388
        %v397 = vld [vmem:[%s254] sm:$0xff]
        %v398 = vld [vmem:[%s254 + $0x8] sm:$0xff]
        %v399 = vld [vmem:[%s254 + $0x14] sm:$0xff]
        %v400 = vld [vmem:[%s254 + $0x1c] sm:$0xff]
        %405 = vrot.lane.b32.xlu0 %v397, 1
        %v406 = vpop.permute.xlu0 %405
        %407 = vrot.lane.b32.xlu0 %v398, 1
        %v408 = vpop.permute.xlu0 %407
        %409 = vrot.lane.b32.xlu0 %v399, 1
        %v410 = vpop.permute.xlu0 %409
        %411 = vrot.lane.b32.xlu0 %v400, 1
        %v412 = vpop.permute.xlu0 %411
        %v413 = vrot.slane %v406, 4
        %v414 = vrot.slane %v408, 4
        %v415 = vrot.slane %v410, 4
        %v416 = vrot.slane %v412, 4
        %v417 = vsel %vm311, %v413, %v414
        %vm418 = vcmask 7168
        %v419 = vsel %vm418, %v406, %v417
        %v420 = vsel %vm418, %v408, %v414
        %v421 = vsel %vm311, %v415, %v416
        %v422 = vsel %vm418, %v410, %v421
        %v423 = vsel %vm418, %v412, %v416
        %428 = vst [vmem:[#allocation2 + $0x48] sm:$0xff] %v419
        %429 = vst [vmem:[#allocation2 + $0x50] sm:$0xf] %v420
        %430 = vst [vmem:[#allocation2 + $0x54] sm:$0xff] %v422
        %431 = vst [vmem:[#allocation2 + $0x5c] sm:$0xf] %v423
        %v432 = vld [vmem:[%s254 + $0x4] sm:$0xff]
        %v433 = vld [vmem:[%s254 + $0xc] sm:$0xf]
        %v434 = vld [vmem:[%s254 + $0x18] sm:$0xff]
        %v435 = vld [vmem:[%s254 + $0x20] sm:$0xf]
        %436 = vst [vmem:[#allocation2 + $0x60] sm:$0xff] %v432
        %437 = vst [vmem:[#allocation2 + $0x68] sm:$0xf] %v433
        %438 = vst [vmem:[#allocation2 + $0x6c] sm:$0xff] %v434
        %439 = vst [vmem:[#allocation2 + $0x74] sm:$0xf] %v435
        %v440 = vld [vmem:[%s254 + $0x4] sm:$0xff]
        %v441 = vld [vmem:[%s254 + $0xc] sm:$0xff]
        %v442 = vld [vmem:[%s254 + $0x18] sm:$0xff]
        %v443 = vld [vmem:[%s254 + $0x20] sm:$0xff]
        %448 = vrot.lane.b32.xlu0 %v440, 127
        %v449 = vpop.permute.xlu0 %448
        %450 = vrot.lane.b32.xlu0 %v441, 127
        %v451 = vpop.permute.xlu0 %450
        %452 = vrot.lane.b32.xlu0 %v442, 127
        %v453 = vpop.permute.xlu0 %452
        %454 = vrot.lane.b32.xlu0 %v443, 127
        %v455 = vpop.permute.xlu0 %454
        %v456 = vrot.slane %v449, 4
        %v457 = vrot.slane %v451, 4
        %v458 = vrot.slane %v453, 4
        %v459 = vrot.slane %v455, 4
        %v460 = vsel %vm311, %v456, %v457
        %vm461 = vcmask 1039360
        %v462 = vsel %vm461, %v449, %v460
        %v463 = vsel %vm461, %v451, %v457
        %v464 = vsel %vm311, %v458, %v459
        %v465 = vsel %vm461, %v453, %v464
        %v466 = vsel %vm461, %v455, %v459
        %471 = vst [vmem:[#allocation2 + $0x78] sm:$0xff] %v462
        %472 = vst [vmem:[#allocation2 + $0x80] sm:$0xf] %v463
        %473 = vst [vmem:[#allocation2 + $0x84] sm:$0xff] %v465
        %474 = vst [vmem:[#allocation2 + $0x8c] sm:$0xf] %v466
        %v475 = vld [vmem:[%s254 + $0x4] sm:$0xff]
        %v476 = vld [vmem:[%s254 + $0xc] sm:$0xff]
        %v477 = vld [vmem:[%s254 + $0x18] sm:$0xff]
        %v478 = vld [vmem:[%s254 + $0x20] sm:$0xff]
        %483 = vrot.lane.b32.xlu0 %v475, 111
        %v484 = vpop.permute.xlu0 %483
        %485 = vrot.lane.b32.xlu0 %v476, 111
        %v486 = vpop.permute.xlu0 %485
        %487 = vrot.lane.b32.xlu0 %v477, 111
        %v488 = vpop.permute.xlu0 %487
        %489 = vrot.lane.b32.xlu0 %v478, 111
        %v490 = vpop.permute.xlu0 %489
        %v491 = vrot.slane %v484, 4
        %v492 = vrot.slane %v486, 4
        %v493 = vrot.slane %v488, 4
        %v494 = vrot.slane %v490, 4
        %v495 = vsel %vm311, %v491, %v492
        %vm496 = vcmask 908288
        %v497 = vsel %vm496, %v484, %v495
        %v498 = vsel %vm496, %v486, %v492
        %v499 = vsel %vm311, %v493, %v494
        %v500 = vsel %vm496, %v488, %v499
        %v501 = vsel %vm496, %v490, %v494
        %506 = vst [vmem:[#allocation2 + $0x90] sm:$0xff] %v497
        %507 = vst [vmem:[#allocation2 + $0x98] sm:$0xf] %v498
        %508 = vst [vmem:[#allocation2 + $0x9c] sm:$0xff] %v500
        %509 = vst [vmem:[#allocation2 + $0xa4] sm:$0xf] %v501
        %v510 = vld [vmem:[%s254 + $0x4] sm:$0xff]
        %v511 = vld [vmem:[%s254 + $0xc] sm:$0xff]
        %v512 = vld [vmem:[%s254 + $0x18] sm:$0xff]
        %v513 = vld [vmem:[%s254 + $0x20] sm:$0xff]
        %518 = vrot.lane.b32.xlu0 %v510, 110
        %v519 = vpop.permute.xlu0 %518
        %520 = vrot.lane.b32.xlu0 %v511, 110
        %v521 = vpop.permute.xlu0 %520
        %522 = vrot.lane.b32.xlu0 %v512, 110
        %v523 = vpop.permute.xlu0 %522
        %524 = vrot.lane.b32.xlu0 %v513, 110
        %v525 = vpop.permute.xlu0 %524
        %v526 = vrot.slane %v519, 4
        %v527 = vrot.slane %v521, 4
        %v528 = vrot.slane %v523, 4
        %v529 = vrot.slane %v525, 4
        %v530 = vsel %vm311, %v526, %v527
        %vm531 = vcmask 900096
        %v532 = vsel %vm531, %v519, %v530
        %v533 = vsel %vm531, %v521, %v527
        %v534 = vsel %vm311, %v528, %v529
        %v535 = vsel %vm531, %v523, %v534
        %v536 = vsel %vm531, %v525, %v529
        %541 = vst [vmem:[#allocation2 + $0xa8] sm:$0xff] %v532
        %542 = vst [vmem:[#allocation2 + $0xb0] sm:$0xf] %v533
        %543 = vst [vmem:[#allocation2 + $0xb4] sm:$0xff] %v535
        %544 = vst [vmem:[#allocation2 + $0xbc] sm:$0xf] %v536
        %v545 = vld [vmem:[%s254 + $0x4] sm:$0xff]
        %v546 = vld [vmem:[%s254 + $0xc] sm:$0xff]
        %v547 = vld [vmem:[%s254 + $0x18] sm:$0xff]
        %v548 = vld [vmem:[%s254 + $0x20] sm:$0xff]
        %553 = vrot.lane.b32.xlu0 %v545, 109
        %v554 = vpop.permute.xlu0 %553
        %555 = vrot.lane.b32.xlu0 %v546, 109
        %v556 = vpop.permute.xlu0 %555
        %557 = vrot.lane.b32.xlu0 %v547, 109
        %v558 = vpop.permute.xlu0 %557
        %559 = vrot.lane.b32.xlu0 %v548, 109
        %v560 = vpop.permute.xlu0 %559
        %v561 = vrot.slane %v554, 4
        %v562 = vrot.slane %v556, 4
        %v563 = vrot.slane %v558, 4
        %v564 = vrot.slane %v560, 4
        %v565 = vsel %vm311, %v561, %v562
        %vm566 = vcmask 891904
        %v567 = vsel %vm566, %v554, %v565
        %v568 = vsel %vm566, %v556, %v562
        %v569 = vsel %vm311, %v563, %v564
        %v570 = vsel %vm566, %v558, %v569
        %v571 = vsel %vm566, %v560, %v564
        %576 = vst [vmem:[#allocation2 + $0xc0] sm:$0xff] %v567
        %577 = vst [vmem:[#allocation2 + $0xc8] sm:$0xf] %v568
        %578 = vst [vmem:[#allocation2 + $0xcc] sm:$0xff] %v570
        %579 = vst [vmem:[#allocation2 + $0xd4] sm:$0xf] %v571
        %v580 = vld [vmem:[#allocation8] sm:$0xff]
        %v581 = vld [vmem:[#allocation8 + $0x8] sm:$0xff]
        %v582 = vld [vmem:[#allocation8 + $0x10] sm:$0xff]
        %v583 = vld [vmem:[#allocation8 + $0x18] sm:$0xff]
        %v584 = vld [vmem:[#allocation2] sm:$0xff]
        %v585 = vld [vmem:[#allocation2 + $0x8] sm:$0xf]
        %v586 = vld [vmem:[#allocation2 + $0xc] sm:$0xff]
        %v587 = vld [vmem:[#allocation2 + $0x14] sm:$0xf]
        %v588 = vld [vmem:[#allocation2 + $0x18] sm:$0xff]
        %v589 = vld [vmem:[#allocation2 + $0x20] sm:$0xf]
        %v590 = vld [vmem:[#allocation2 + $0x24] sm:$0xff]
        %v591 = vld [vmem:[#allocation2 + $0x2c] sm:$0xf]
        %v592 = vld [vmem:[#allocation2 + $0x30] sm:$0xff]
        %v593 = vld [vmem:[#allocation2 + $0x38] sm:$0xf]
        %v594 = vld [vmem:[#allocation2 + $0x3c] sm:$0xff]
        %v595 = vld [vmem:[#allocation2 + $0x44] sm:$0xf]
        %v596 = vld [vmem:[#allocation2 + $0x48] sm:$0xff]
        %v597 = vld [vmem:[#allocation2 + $0x50] sm:$0xf]
        %v598 = vld [vmem:[#allocation2 + $0x54] sm:$0xff]
        %v599 = vld [vmem:[#allocation2 + $0x5c] sm:$0xf]
        %v600 = vld [vmem:[#allocation2 + $0x60] sm:$0xff]
        %v601 = vld [vmem:[#allocation2 + $0x68] sm:$0xf]
        %v602 = vld [vmem:[#allocation2 + $0x6c] sm:$0xff]
        %v603 = vld [vmem:[#allocation2 + $0x74] sm:$0xf]
        %v604 = vld [vmem:[#allocation2 + $0x78] sm:$0xff]
        %v605 = vld [vmem:[#allocation2 + $0x80] sm:$0xf]
        %v606 = vld [vmem:[#allocation2 + $0x84] sm:$0xff]
        %v607 = vld [vmem:[#allocation2 + $0x8c] sm:$0xf]
        %v608 = vld [vmem:[#allocation2 + $0x90] sm:$0xff]
        %v609 = vld [vmem:[#allocation2 + $0x98] sm:$0xf]
        %v610 = vld [vmem:[#allocation2 + $0x9c] sm:$0xff]
        %v611 = vld [vmem:[#allocation2 + $0xa4] sm:$0xf]
        %v612 = vld [vmem:[#allocation2 + $0xa8] sm:$0xff]
        %v613 = vld [vmem:[#allocation2 + $0xb0] sm:$0xf]
        %v614 = vld [vmem:[#allocation2 + $0xb4] sm:$0xff]
        %v615 = vld [vmem:[#allocation2 + $0xbc] sm:$0xf]
        %v616 = vld [vmem:[#allocation2 + $0xc0] sm:$0xff]
        %v617 = vld [vmem:[#allocation2 + $0xc8] sm:$0xf]
        %v618 = vld [vmem:[#allocation2 + $0xcc] sm:$0xff]
        %v619 = vld [vmem:[#allocation2 + $0xd4] sm:$0xf]
        %v620 = vld [vmem:[%s2] sm:$0xff]
        %v621 = vld [vmem:[%s2 + $0x8] sm:$0xff]
        %v622 = vld [vmem:[%s2 + $0x10] sm:$0xff]
        %v623 = vld [vmem:[%s2 + $0x18] sm:$0xff]
        %625 = vset.pattern.permute.xlu0 0
        %626 = vperm.xlu0 %625, %v620
        %v627 = vpop.permute.xlu0 %626
        %630 = vset.pattern.permute.xlu0 0
        %631 = vperm.xlu0 %630, %v621
        %v632 = vpop.permute.xlu0 %631
        %635 = vset.pattern.permute.xlu0 0
        %636 = vperm.xlu0 %635, %v622
        %v637 = vpop.permute.xlu0 %636
        %640 = vset.pattern.permute.xlu0 0
        %641 = vperm.xlu0 %640, %v623
        %v642 = vpop.permute.xlu0 %641
        %v648 = vunpack.c.l.b16 %v580
        %v649 = vunpack.c.h.b16 %v580
        %v650 = vunpack.c.l.b16 %v581
        %v651 = vunpack.c.h.b16 %v581
        %v652 = vunpack.c.l.b16 %v582
        %v653 = vunpack.c.h.b16 %v582
        %v654 = vunpack.c.l.b16 %v583
        %v655 = vunpack.c.h.b16 %v583
        %v656 = vpack.c.b16 %v650, %v648
        %v657 = vpack.c.b16 %v651, %v649
        %v658 = vpack.c.b16 %v654, %v652
        %v659 = vpack.c.b16 %v655, %v653
        %v698 = vunpack.c.l.b16 %v584
        %v699 = vunpack.c.h.b16 %v584
        %v700 = vunpack.c.l.b16 %v585
        %v701 = vunpack.c.l.b16 %v586
        %v702 = vunpack.c.h.b16 %v586
        %v703 = vunpack.c.l.b16 %v587
        %v704 = vunpack.c.l.b16 %v588
        %v705 = vunpack.c.h.b16 %v588
        %v706 = vunpack.c.l.b16 %v589
        %v707 = vunpack.c.l.b16 %v590
        %v708 = vunpack.c.h.b16 %v590
        %v709 = vunpack.c.l.b16 %v591
        %v710 = vunpack.c.l.b16 %v592
        %v711 = vunpack.c.h.b16 %v592
        %v712 = vunpack.c.l.b16 %v593
        %v713 = vunpack.c.l.b16 %v594
        %v714 = vunpack.c.h.b16 %v594
        %v715 = vunpack.c.l.b16 %v595
        %v716 = vunpack.c.l.b16 %v596
        %v717 = vunpack.c.h.b16 %v596
        %v718 = vunpack.c.l.b16 %v597
        %v719 = vunpack.c.l.b16 %v598
        %v720 = vunpack.c.h.b16 %v598
        %v721 = vunpack.c.l.b16 %v599
        %v722 = vunpack.c.l.b16 %v600
        %v723 = vunpack.c.h.b16 %v600
        %v724 = vunpack.c.l.b16 %v601
        %v725 = vunpack.c.l.b16 %v602
        %v726 = vunpack.c.h.b16 %v602
        %v727 = vunpack.c.l.b16 %v603
        %v728 = vunpack.c.l.b16 %v604
        %v729 = vunpack.c.h.b16 %v604
        %v730 = vunpack.c.l.b16 %v605
        %v731 = vunpack.c.l.b16 %v606
        %v732 = vunpack.c.h.b16 %v606
        %v733 = vunpack.c.l.b16 %v607
        %v734 = vunpack.c.l.b16 %v608
        %v735 = vunpack.c.h.b16 %v608
        %v736 = vunpack.c.l.b16 %v609
        %v737 = vunpack.c.l.b16 %v610
        %v738 = vunpack.c.h.b16 %v610
        %v739 = vunpack.c.l.b16 %v611
        %v740 = vunpack.c.l.b16 %v612
        %v741 = vunpack.c.h.b16 %v612
        %v742 = vunpack.c.l.b16 %v613
        %v743 = vunpack.c.l.b16 %v614
        %v744 = vunpack.c.h.b16 %v614
        %v745 = vunpack.c.l.b16 %v615
        %v746 = vunpack.c.l.b16 %v616
        %v747 = vunpack.c.h.b16 %v616
        %v748 = vunpack.c.l.b16 %v617
        %v749 = vunpack.c.l.b16 %v618
        %v750 = vunpack.c.h.b16 %v618
        %v751 = vunpack.c.l.b16 %v619
        %v752 = vpack.c.b16 %v701, %v698
        %v753 = vpack.c.b16 %v702, %v699
        %v754 = vpack.c.b16 %v703, %v700
        %v755 = vpack.c.b16 %v707, %v704
        %v756 = vpack.c.b16 %v708, %v705
        %v757 = vpack.c.b16 %v709, %v706
        %v758 = vpack.c.b16 %v713, %v710
        %v759 = vpack.c.b16 %v714, %v711
        %v760 = vpack.c.b16 %v715, %v712
        %v761 = vpack.c.b16 %v719, %v716
        %v762 = vpack.c.b16 %v720, %v717
        %v763 = vpack.c.b16 %v721, %v718
        %v764 = vpack.c.b16 %v725, %v722
        %v765 = vpack.c.b16 %v726, %v723
        %v766 = vpack.c.b16 %v727, %v724
        %v767 = vpack.c.b16 %v731, %v728
        %v768 = vpack.c.b16 %v732, %v729
        %v769 = vpack.c.b16 %v733, %v730
        %v770 = vpack.c.b16 %v737, %v734
        %v771 = vpack.c.b16 %v738, %v735
        %v772 = vpack.c.b16 %v739, %v736
        %v773 = vpack.c.b16 %v743, %v740
        %v774 = vpack.c.b16 %v744, %v741
        %v775 = vpack.c.b16 %v745, %v742
        %v776 = vpack.c.b16 %v749, %v746
        %v777 = vpack.c.b16 %v750, %v747
        %v778 = vpack.c.b16 %v751, %v748
        %vm806 = vcmask 130048
        %v808 = vsel %vm806, %v657, 0
        %v811 = vsel %vm806, %v659, 0
        %813 = vmatpush.bf16.msra.mxu0 %v773
        %814 = vmatpush.bf16.msra.mxu0 %v770
        %815 = vmatpush.bf16.msra.mxu0 %v767
        %816 = vmatpush.bf16.msra.mxu0 %v764
        %817 = vmatpush.bf16.msra.mxu0 %v761
        %818 = vmatpush.bf16.msra.mxu0 %v758
        %819 = vmatpush.bf16.msra.mxu0 %v755
        %820 = vmatpush.bf16.msra.mxu0 %v752
        %821 = vmatmul.bf16.gmra.mxu0 %v656
        %v822 = vpop.f32.mrf.mxu0
        %v823 = vadd.f32 %v627, %v822
        %v824 = vpop.f32.mrf.mxu0
        %v825 = vadd.f32 %v632, %v824
        %826 = vmatmul.bf16.gmra.mxu0 %v658
        %v827 = vpop.f32.mrf.mxu0
        %v828 = vadd.f32 %v637, %v827
        %v829 = vpop.f32.mrf.mxu0
        %v830 = vadd.f32 %v642, %v829
        %831 = vdwg.mxu0
        %832 = vmatpush.bf16.msra.mxu0 0
        %833 = vmatpush.bf16.msra.mxu0 0
        %834 = vmatpush.bf16.msra.mxu0 0
        %835 = vmatpush.bf16.msra.mxu0 0
        %836 = vmatpush.bf16.msra.mxu0 0
        %837 = vmatpush.bf16.msra.mxu0 0
        %838 = vmatpush.bf16.msra.mxu0 0
        %839 = vmatpush.bf16.msra.mxu0 %v776
        %840 = vmatmul.bf16.gmra.mxu0 %v808
        %v841 = vpop.f32.mrf.mxu0
        %v842 = vadd.f32 %v823, %v841
        %v843 = vpop.f32.mrf.mxu0
        %v844 = vadd.f32 %v825, %v843
        %845 = vmatmul.bf16.gmra.mxu0 %v811
        %v846 = vpop.f32.mrf.mxu0
        %v847 = vadd.f32 %v828, %v846
        %v848 = vpop.f32.mrf.mxu0
        %v849 = vadd.f32 %v830, %v848
        %850 = vdwg.mxu0
        %851 = vmatpush.bf16.msra.mxu0 %v774
        %852 = vmatpush.bf16.msra.mxu0 %v771
        %853 = vmatpush.bf16.msra.mxu0 %v768
        %854 = vmatpush.bf16.msra.mxu0 %v765
        %855 = vmatpush.bf16.msra.mxu0 %v762
        %856 = vmatpush.bf16.msra.mxu0 %v759
        %857 = vmatpush.bf16.msra.mxu0 %v756
        %858 = vmatpush.bf16.msra.mxu0 %v753
        %859 = vmatmul.bf16.gmra.mxu0 %v656
        %v860 = vpop.f32.mrf.mxu0
        %v861 = vadd.f32 %v627, %v860
        %v862 = vpop.f32.mrf.mxu0
        %v863 = vadd.f32 %v632, %v862
        %864 = vmatmul.bf16.gmra.mxu0 %v658
        %v865 = vpop.f32.mrf.mxu0
        %v866 = vadd.f32 %v637, %v865
        %v867 = vpop.f32.mrf.mxu0
        %v868 = vadd.f32 %v642, %v867
        %869 = vdwg.mxu0
        %870 = vmatpush.bf16.msra.mxu0 0
        %871 = vmatpush.bf16.msra.mxu0 0
        %872 = vmatpush.bf16.msra.mxu0 0
        %873 = vmatpush.bf16.msra.mxu0 0
        %874 = vmatpush.bf16.msra.mxu0 0
        %875 = vmatpush.bf16.msra.mxu0 0
        %876 = vmatpush.bf16.msra.mxu0 0
        %877 = vmatpush.bf16.msra.mxu0 %v777
        %878 = vmatmul.bf16.gmra.mxu0 %v808
        %v879 = vpop.f32.mrf.mxu0
        %v880 = vadd.f32 %v861, %v879
        %v881 = vpop.f32.mrf.mxu0
        %v882 = vadd.f32 %v863, %v881
        %883 = vmatmul.bf16.gmra.mxu0 %v811
        %v884 = vpop.f32.mrf.mxu0
        %v885 = vadd.f32 %v866, %v884
        %v886 = vpop.f32.mrf.mxu0
        %v887 = vadd.f32 %v868, %v886
        %888 = vdwg.mxu0
        %889 = vmatpush.bf16.msra.mxu0 %v775
        %890 = vmatpush.bf16.msra.mxu0 %v772
        %891 = vmatpush.bf16.msra.mxu0 %v769
        %892 = vmatpush.bf16.msra.mxu0 %v766
        %893 = vmatpush.bf16.msra.mxu0 %v763
        %894 = vmatpush.bf16.msra.mxu0 %v760
        %895 = vmatpush.bf16.msra.mxu0 %v757
        %896 = vmatpush.bf16.msra.mxu0 %v754
        %897 = vmatmul.bf16.gmra.mxu0 %v656
        %v898 = vpop.f32.mrf.mxu0
        %v899 = vadd.f32 %v627, %v898
        %v900 = vpop.f32.mrf.mxu0
        %v901 = vadd.f32 %v632, %v900
        %902 = vmatmul.bf16.gmra.mxu0 %v658
        %v903 = vpop.f32.mrf.mxu0
        %v904 = vadd.f32 %v637, %v903
        %v905 = vpop.f32.mrf.mxu0
        %v906 = vadd.f32 %v642, %v905
        %907 = vdwg.mxu0
        %908 = vmatpush.bf16.msra.mxu0 0
        %909 = vmatpush.bf16.msra.mxu0 0
        %910 = vmatpush.bf16.msra.mxu0 0
        %911 = vmatpush.bf16.msra.mxu0 0
        %912 = vmatpush.bf16.msra.mxu0 0
        %913 = vmatpush.bf16.msra.mxu0 0
        %914 = vmatpush.bf16.msra.mxu0 0
        %915 = vmatpush.bf16.msra.mxu0 %v778
        %916 = vmatmul.bf16.gmra.mxu0 %v808
        %v917 = vpop.f32.mrf.mxu0
        %v918 = vadd.f32 %v899, %v917
        %v919 = vpop.f32.mrf.mxu0
        %v920 = vadd.f32 %v901, %v919
        %921 = vmatmul.bf16.gmra.mxu0 %v811
        %v922 = vpop.f32.mrf.mxu0
        %v923 = vadd.f32 %v904, %v922
        %v924 = vpop.f32.mrf.mxu0
        %v925 = vadd.f32 %v906, %v924
        %926 = vdwg.mxu0
        %v927 = vmax.f32 %v842, 0.0
        %v928 = vmax.f32 %v880, 0.0
        %v929 = vmax.f32 %v918, 0.0
        %v930 = vmax.f32 %v844, 0.0
        %v931 = vmax.f32 %v882, 0.0
        %v932 = vmax.f32 %v920, 0.0
        %v933 = vmax.f32 %v847, 0.0
        %v934 = vmax.f32 %v885, 0.0
        %v935 = vmax.f32 %v923, 0.0
        %v936 = vmax.f32 %v849, 0.0
        %v937 = vmax.f32 %v887, 0.0
        %v938 = vmax.f32 %v925, 0.0
        %v940 = vperm.slane %v290, 0
        %v941 = vperm.slane %v290, 1
        %v942 = vperm.slane %v290, 2
        %v946 = vmul.f32 %v927, %v940
        %v947 = vmul.f32 %v928, %v941
        %v948 = vmul.f32 %v929, %v942
        %v949 = vmul.f32 %v930, %v940
        %v950 = vmul.f32 %v931, %v941
        %v951 = vmul.f32 %v932, %v942
        %v952 = vmul.f32 %v933, %v940
        %v953 = vmul.f32 %v934, %v941
        %v954 = vmul.f32 %v935, %v942
        %v955 = vmul.f32 %v936, %v940
        %v956 = vmul.f32 %v937, %v941
        %v957 = vmul.f32 %v938, %v942
        %958 = vst [vmem:[#allocation3] sm:$0xf] 0
        %959 = vst [vmem:[#allocation3 + $0x14] sm:$0xf] 0
        %960 = vst [vmem:[#allocation3 + $0x28] sm:$0xf] 0
        %961 = vst [vmem:[#allocation3 + $0x3c] sm:$0xf] 0
        %962 = vst [vmem:[#allocation3 + $0x10] sm:$0xf] 0
        %963 = vst [vmem:[#allocation3 + $0x24] sm:$0xf] 0
        %964 = vst [vmem:[#allocation3 + $0x38] sm:$0xf] 0
        %965 = vst [vmem:[#allocation3 + $0x4c] sm:$0xf] 0
        %v966 = vpack.c.bf16 %v947, %v946
        %v967 = vpack.c.bf16 %v948, %v948
        %v968 = vpack.c.bf16 %v950, %v949
        %v969 = vpack.c.bf16 %v951, %v951
        %v970 = vpack.c.bf16 %v953, %v952
        %v971 = vpack.c.bf16 %v954, %v954
        %v972 = vpack.c.bf16 %v956, %v955
        %v973 = vpack.c.bf16 %v957, %v957
        %974 = vst [vmem:[#allocation3 + $0x4] sm:$0xff] %v966
        %975 = vst [vmem:[#allocation3 + $0xc] sm:$0xf] %v967
        %976 = vst [vmem:[#allocation3 + $0x18] sm:$0xff] %v968
        %977 = vst [vmem:[#allocation3 + $0x20] sm:$0xf] %v969
        %978 = vst [vmem:[#allocation3 + $0x2c] sm:$0xff] %v970
        %979 = vst [vmem:[#allocation3 + $0x34] sm:$0xf] %v971
        %980 = vst [vmem:[#allocation3 + $0x40] sm:$0xff] %v972
        %981 = vst [vmem:[#allocation3 + $0x48] sm:$0xf] %v973
        %v982 = vld [vmem:[#allocation3] sm:$0xff]
        %v983 = vld [vmem:[#allocation3 + $0x8] sm:$0xff]
        %v984 = vld [vmem:[#allocation3 + $0x14] sm:$0xff]
        %v985 = vld [vmem:[#allocation3 + $0x1c] sm:$0xff]
        %v986 = vld [vmem:[#allocation3 + $0x28] sm:$0xff]
        %v987 = vld [vmem:[#allocation3 + $0x30] sm:$0xff]
        %v988 = vld [vmem:[#allocation3 + $0x3c] sm:$0xff]
        %v989 = vld [vmem:[#allocation3 + $0x44] sm:$0xff]
        %998 = vrot.lane.b32.xlu0 %v982, 19
        %v999 = vpop.permute.xlu0 %998
        %1000 = vrot.lane.b32.xlu0 %v983, 19
        %v1001 = vpop.permute.xlu0 %1000
        %1002 = vrot.lane.b32.xlu0 %v984, 19
        %v1003 = vpop.permute.xlu0 %1002
        %1004 = vrot.lane.b32.xlu0 %v985, 19
        %v1005 = vpop.permute.xlu0 %1004
        %1006 = vrot.lane.b32.xlu0 %v986, 19
        %v1007 = vpop.permute.xlu0 %1006
        %1008 = vrot.lane.b32.xlu0 %v987, 19
        %v1009 = vpop.permute.xlu0 %1008
        %1010 = vrot.lane.b32.xlu0 %v988, 19
        %v1011 = vpop.permute.xlu0 %1010
        %1012 = vrot.lane.b32.xlu0 %v989, 19
        %v1013 = vpop.permute.xlu0 %1012
        %v1014 = vrot.slane %v999, 4
        %v1015 = vrot.slane %v1001, 4
        %v1016 = vrot.slane %v1003, 4
        %v1017 = vrot.slane %v1005, 4
        %v1018 = vrot.slane %v1007, 4
        %v1019 = vrot.slane %v1009, 4
        %v1020 = vrot.slane %v1011, 4
        %v1021 = vrot.slane %v1013, 4
        %v1022 = vsel %vm311, %v1014, %v1015
        %v1023 = vsel %vm313, %v999, %v1022
        %v1024 = vsel %vm313, %v1001, %v1015
        %v1025 = vsel %vm311, %v1016, %v1017
        %v1026 = vsel %vm313, %v1003, %v1025
        %v1027 = vsel %vm313, %v1005, %v1017
        %v1028 = vsel %vm311, %v1018, %v1019
        %v1029 = vsel %vm313, %v1007, %v1028
        %v1030 = vsel %vm313, %v1009, %v1019
        %v1031 = vsel %vm311, %v1020, %v1021
        %v1032 = vsel %vm313, %v1011, %v1031
        %v1033 = vsel %vm313, %v1013, %v1021
        %1042 = vst [vmem:[#allocation4] sm:$0xff] %v1023
        %1043 = vst [vmem:[#allocation4 + $0x8] sm:$0xf] %v1024
        %1044 = vst [vmem:[#allocation4 + $0xc] sm:$0xff] %v1026
        %1045 = vst [vmem:[#allocation4 + $0x14] sm:$0xf] %v1027
        %1046 = vst [vmem:[#allocation4 + $0x18] sm:$0xff] %v1029
        %1047 = vst [vmem:[#allocation4 + $0x20] sm:$0xf] %v1030
        %1048 = vst [vmem:[#allocation4 + $0x24] sm:$0xff] %v1032
        %1049 = vst [vmem:[#allocation4 + $0x2c] sm:$0xf] %v1033
        %v1050 = vld [vmem:[#allocation3] sm:$0xff]
        %v1051 = vld [vmem:[#allocation3 + $0x8] sm:$0xff]
        %v1052 = vld [vmem:[#allocation3 + $0x14] sm:$0xff]
        %v1053 = vld [vmem:[#allocation3 + $0x1c] sm:$0xff]
        %v1054 = vld [vmem:[#allocation3 + $0x28] sm:$0xff]
        %v1055 = vld [vmem:[#allocation3 + $0x30] sm:$0xff]
        %v1056 = vld [vmem:[#allocation3 + $0x3c] sm:$0xff]
        %v1057 = vld [vmem:[#allocation3 + $0x44] sm:$0xff]
        %1066 = vrot.lane.b32.xlu0 %v1050, 18
        %v1067 = vpop.permute.xlu0 %1066
        %1068 = vrot.lane.b32.xlu0 %v1051, 18
        %v1069 = vpop.permute.xlu0 %1068
        %1070 = vrot.lane.b32.xlu0 %v1052, 18
        %v1071 = vpop.permute.xlu0 %1070
        %1072 = vrot.lane.b32.xlu0 %v1053, 18
        %v1073 = vpop.permute.xlu0 %1072
        %1074 = vrot.lane.b32.xlu0 %v1054, 18
        %v1075 = vpop.permute.xlu0 %1074
        %1076 = vrot.lane.b32.xlu0 %v1055, 18
        %v1077 = vpop.permute.xlu0 %1076
        %1078 = vrot.lane.b32.xlu0 %v1056, 18
        %v1079 = vpop.permute.xlu0 %1078
        %1080 = vrot.lane.b32.xlu0 %v1057, 18
        %v1081 = vpop.permute.xlu0 %1080
        %v1082 = vrot.slane %v1067, 4
        %v1083 = vrot.slane %v1069, 4
        %v1084 = vrot.slane %v1071, 4
        %v1085 = vrot.slane %v1073, 4
        %v1086 = vrot.slane %v1075, 4
        %v1087 = vrot.slane %v1077, 4
        %v1088 = vrot.slane %v1079, 4
        %v1089 = vrot.slane %v1081, 4
        %v1090 = vsel %vm311, %v1082, %v1083
        %v1091 = vsel %vm348, %v1067, %v1090
        %v1092 = vsel %vm348, %v1069, %v1083
        %v1093 = vsel %vm311, %v1084, %v1085
        %v1094 = vsel %vm348, %v1071, %v1093
        %v1095 = vsel %vm348, %v1073, %v1085
        %v1096 = vsel %vm311, %v1086, %v1087
        %v1097 = vsel %vm348, %v1075, %v1096
        %v1098 = vsel %vm348, %v1077, %v1087
        %v1099 = vsel %vm311, %v1088, %v1089
        %v1100 = vsel %vm348, %v1079, %v1099
        %v1101 = vsel %vm348, %v1081, %v1089
        %1110 = vst [vmem:[#allocation4 + $0x30] sm:$0xff] %v1091
        %1111 = vst [vmem:[#allocation4 + $0x38] sm:$0xf] %v1092
        %1112 = vst [vmem:[#allocation4 + $0x3c] sm:$0xff] %v1094
        %1113 = vst [vmem:[#allocation4 + $0x44] sm:$0xf] %v1095
        %1114 = vst [vmem:[#allocation4 + $0x48] sm:$0xff] %v1097
        %1115 = vst [vmem:[#allocation4 + $0x50] sm:$0xf] %v1098
        %1116 = vst [vmem:[#allocation4 + $0x54] sm:$0xff] %v1100
        %1117 = vst [vmem:[#allocation4 + $0x5c] sm:$0xf] %v1101
        %v1118 = vld [vmem:[#allocation3] sm:$0xff]
        %v1119 = vld [vmem:[#allocation3 + $0x8] sm:$0xff]
        %v1120 = vld [vmem:[#allocation3 + $0x14] sm:$0xff]
        %v1121 = vld [vmem:[#allocation3 + $0x1c] sm:$0xff]
        %v1122 = vld [vmem:[#allocation3 + $0x28] sm:$0xff]
        %v1123 = vld [vmem:[#allocation3 + $0x30] sm:$0xff]
        %v1124 = vld [vmem:[#allocation3 + $0x3c] sm:$0xff]
        %v1125 = vld [vmem:[#allocation3 + $0x44] sm:$0xff]
        %1134 = vrot.lane.b32.xlu0 %v1118, 17
        %v1135 = vpop.permute.xlu0 %1134
        %1136 = vrot.lane.b32.xlu0 %v1119, 17
        %v1137 = vpop.permute.xlu0 %1136
        %1138 = vrot.lane.b32.xlu0 %v1120, 17
        %v1139 = vpop.permute.xlu0 %1138
        %1140 = vrot.lane.b32.xlu0 %v1121, 17
        %v1141 = vpop.permute.xlu0 %1140
        %1142 = vrot.lane.b32.xlu0 %v1122, 17
        %v1143 = vpop.permute.xlu0 %1142
        %1144 = vrot.lane.b32.xlu0 %v1123, 17
        %v1145 = vpop.permute.xlu0 %1144
        %1146 = vrot.lane.b32.xlu0 %v1124, 17
        %v1147 = vpop.permute.xlu0 %1146
        %1148 = vrot.lane.b32.xlu0 %v1125, 17
        %v1149 = vpop.permute.xlu0 %1148
        %v1150 = vrot.slane %v1135, 4
        %v1151 = vrot.slane %v1137, 4
        %v1152 = vrot.slane %v1139, 4
        %v1153 = vrot.slane %v1141, 4
        %v1154 = vrot.slane %v1143, 4
        %v1155 = vrot.slane %v1145, 4
        %v1156 = vrot.slane %v1147, 4
        %v1157 = vrot.slane %v1149, 4
        %v1158 = vsel %vm311, %v1150, %v1151
        %v1159 = vsel %vm383, %v1135, %v1158
        %v1160 = vsel %vm383, %v1137, %v1151
        %v1161 = vsel %vm311, %v1152, %v1153
        %v1162 = vsel %vm383, %v1139, %v1161
        %v1163 = vsel %vm383, %v1141, %v1153
        %v1164 = vsel %vm311, %v1154, %v1155
        %v1165 = vsel %vm383, %v1143, %v1164
        %v1166 = vsel %vm383, %v1145, %v1155
        %v1167 = vsel %vm311, %v1156, %v1157
        %v1168 = vsel %vm383, %v1147, %v1167
        %v1169 = vsel %vm383, %v1149, %v1157
        %1178 = vst [vmem:[#allocation4 + $0x60] sm:$0xff] %v1159
        %1179 = vst [vmem:[#allocation4 + $0x68] sm:$0xf] %v1160
        %1180 = vst [vmem:[#allocation4 + $0x6c] sm:$0xff] %v1162
        %1181 = vst [vmem:[#allocation4 + $0x74] sm:$0xf] %v1163
        %1182 = vst [vmem:[#allocation4 + $0x78] sm:$0xff] %v1165
        %1183 = vst [vmem:[#allocation4 + $0x80] sm:$0xf] %v1166
        %1184 = vst [vmem:[#allocation4 + $0x84] sm:$0xff] %v1168
        %1185 = vst [vmem:[#allocation4 + $0x8c] sm:$0xf] %v1169
        %v1186 = vld [vmem:[#allocation3] sm:$0xff]
        %v1187 = vld [vmem:[#allocation3 + $0x8] sm:$0xff]
        %v1188 = vld [vmem:[#allocation3 + $0x14] sm:$0xff]
        %v1189 = vld [vmem:[#allocation3 + $0x1c] sm:$0xff]
        %v1190 = vld [vmem:[#allocation3 + $0x28] sm:$0xff]
        %v1191 = vld [vmem:[#allocation3 + $0x30] sm:$0xff]
        %v1192 = vld [vmem:[#allocation3 + $0x3c] sm:$0xff]
        %v1193 = vld [vmem:[#allocation3 + $0x44] sm:$0xff]
        %1202 = vrot.lane.b32.xlu0 %v1186, 1
        %v1203 = vpop.permute.xlu0 %1202
        %1204 = vrot.lane.b32.xlu0 %v1187, 1
        %v1205 = vpop.permute.xlu0 %1204
        %1206 = vrot.lane.b32.xlu0 %v1188, 1
        %v1207 = vpop.permute.xlu0 %1206
        %1208 = vrot.lane.b32.xlu0 %v1189, 1
        %v1209 = vpop.permute.xlu0 %1208
        %1210 = vrot.lane.b32.xlu0 %v1190, 1
        %v1211 = vpop.permute.xlu0 %1210
        %1212 = vrot.lane.b32.xlu0 %v1191, 1
        %v1213 = vpop.permute.xlu0 %1212
        %1214 = vrot.lane.b32.xlu0 %v1192, 1
        %v1215 = vpop.permute.xlu0 %1214
        %1216 = vrot.lane.b32.xlu0 %v1193, 1
        %v1217 = vpop.permute.xlu0 %1216
        %v1218 = vrot.slane %v1203, 4
        %v1219 = vrot.slane %v1205, 4
        %v1220 = vrot.slane %v1207, 4
        %v1221 = vrot.slane %v1209, 4
        %v1222 = vrot.slane %v1211, 4
        %v1223 = vrot.slane %v1213, 4
        %v1224 = vrot.slane %v1215, 4
        %v1225 = vrot.slane %v1217, 4
        %v1226 = vsel %vm311, %v1218, %v1219
        %v1227 = vsel %vm418, %v1203, %v1226
        %v1228 = vsel %vm418, %v1205, %v1219
        %v1229 = vsel %vm311, %v1220, %v1221
        %v1230 = vsel %vm418, %v1207, %v1229
        %v1231 = vsel %vm418, %v1209, %v1221
        %v1232 = vsel %vm311, %v1222, %v1223
        %v1233 = vsel %vm418, %v1211, %v1232
        %v1234 = vsel %vm418, %v1213, %v1223
        %v1235 = vsel %vm311, %v1224, %v1225
        %v1236 = vsel %vm418, %v1215, %v1235
        %v1237 = vsel %vm418, %v1217, %v1225
        %1246 = vst [vmem:[#allocation4 + $0x90] sm:$0xff] %v1227
        %1247 = vst [vmem:[#allocation4 + $0x98] sm:$0xf] %v1228
        %1248 = vst [vmem:[#allocation4 + $0x9c] sm:$0xff] %v1230
        %1249 = vst [vmem:[#allocation4 + $0xa4] sm:$0xf] %v1231
        %1250 = vst [vmem:[#allocation4 + $0xa8] sm:$0xff] %v1233
        %1251 = vst [vmem:[#allocation4 + $0xb0] sm:$0xf] %v1234
        %1252 = vst [vmem:[#allocation4 + $0xb4] sm:$0xff] %v1236
        %1253 = vst [vmem:[#allocation4 + $0xbc] sm:$0xf] %v1237
        %v1254 = vld [vmem:[#allocation3 + $0x4] sm:$0xff]
        %v1255 = vld [vmem:[#allocation3 + $0xc] sm:$0xf]
        %v1256 = vld [vmem:[#allocation3 + $0x18] sm:$0xff]
        %v1257 = vld [vmem:[#allocation3 + $0x20] sm:$0xf]
        %v1258 = vld [vmem:[#allocation3 + $0x2c] sm:$0xff]
        %v1259 = vld [vmem:[#allocation3 + $0x34] sm:$0xf]
        %v1260 = vld [vmem:[#allocation3 + $0x40] sm:$0xff]
        %v1261 = vld [vmem:[#allocation3 + $0x48] sm:$0xf]
        %1262 = vst [vmem:[#allocation4 + $0xc0] sm:$0xff] %v1254
        %1263 = vst [vmem:[#allocation4 + $0xc8] sm:$0xf] %v1255
        %1264 = vst [vmem:[#allocation4 + $0xcc] sm:$0xff] %v1256
        %1265 = vst [vmem:[#allocation4 + $0xd4] sm:$0xf] %v1257
        %1266 = vst [vmem:[#allocation4 + $0xd8] sm:$0xff] %v1258
        %1267 = vst [vmem:[#allocation4 + $0xe0] sm:$0xf] %v1259
        %1268 = vst [vmem:[#allocation4 + $0xe4] sm:$0xff] %v1260
        %1269 = vst [vmem:[#allocation4 + $0xec] sm:$0xf] %v1261
        %v1270 = vld [vmem:[#allocation3 + $0x4] sm:$0xff]
        %v1271 = vld [vmem:[#allocation3 + $0xc] sm:$0xff]
        %v1272 = vld [vmem:[#allocation3 + $0x18] sm:$0xff]
        %v1273 = vld [vmem:[#allocation3 + $0x20] sm:$0xff]
        %v1274 = vld [vmem:[#allocation3 + $0x2c] sm:$0xff]
        %v1275 = vld [vmem:[#allocation3 + $0x34] sm:$0xff]
        %v1276 = vld [vmem:[#allocation3 + $0x40] sm:$0xff]
        %v1277 = vld [vmem:[#allocation3 + $0x48] sm:$0xff]
        %1286 = vrot.lane.b32.xlu0 %v1270, 127
        %v1287 = vpop.permute.xlu0 %1286
        %1288 = vrot.lane.b32.xlu0 %v1271, 127
        %v1289 = vpop.permute.xlu0 %1288
        %1290 = vrot.lane.b32.xlu0 %v1272, 127
        %v1291 = vpop.permute.xlu0 %1290
        %1292 = vrot.lane.b32.xlu0 %v1273, 127
        %v1293 = vpop.permute.xlu0 %1292
        %1294 = vrot.lane.b32.xlu0 %v1274, 127
        %v1295 = vpop.permute.xlu0 %1294
        %1296 = vrot.lane.b32.xlu0 %v1275, 127
        %v1297 = vpop.permute.xlu0 %1296
        %1298 = vrot.lane.b32.xlu0 %v1276, 127
        %v1299 = vpop.permute.xlu0 %1298
        %1300 = vrot.lane.b32.xlu0 %v1277, 127
        %v1301 = vpop.permute.xlu0 %1300
        %v1302 = vrot.slane %v1287, 4
        %v1303 = vrot.slane %v1289, 4
        %v1304 = vrot.slane %v1291, 4
        %v1305 = vrot.slane %v1293, 4
        %v1306 = vrot.slane %v1295, 4
        %v1307 = vrot.slane %v1297, 4
        %v1308 = vrot.slane %v1299, 4
        %v1309 = vrot.slane %v1301, 4
        %v1310 = vsel %vm311, %v1302, %v1303
        %v1311 = vsel %vm461, %v1287, %v1310
        %v1312 = vsel %vm461, %v1289, %v1303
        %v1313 = vsel %vm311, %v1304, %v1305
        %v1314 = vsel %vm461, %v1291, %v1313
        %v1315 = vsel %vm461, %v1293, %v1305
        %v1316 = vsel %vm311, %v1306, %v1307
        %v1317 = vsel %vm461, %v1295, %v1316
        %v1318 = vsel %vm461, %v1297, %v1307
        %v1319 = vsel %vm311, %v1308, %v1309
        %v1320 = vsel %vm461, %v1299, %v1319
        %v1321 = vsel %vm461, %v1301, %v1309
        %1330 = vst [vmem:[#allocation4 + $0xf0] sm:$0xff] %v1311
        %1331 = vst [vmem:[#allocation4 + $0xf8] sm:$0xf] %v1312
        %1332 = vst [vmem:[#allocation4 + $0xfc] sm:$0xff] %v1314
        %1333 = vst [vmem:[#allocation4 + $0x104] sm:$0xf] %v1315
        %1334 = vst [vmem:[#allocation4 + $0x108] sm:$0xff] %v1317
        %1335 = vst [vmem:[#allocation4 + $0x110] sm:$0xf] %v1318
        %1336 = vst [vmem:[#allocation4 + $0x114] sm:$0xff] %v1320
        %1337 = vst [vmem:[#allocation4 + $0x11c] sm:$0xf] %v1321
        %v1338 = vld [vmem:[#allocation3 + $0x4] sm:$0xff]
        %v1339 = vld [vmem:[#allocation3 + $0xc] sm:$0xff]
        %v1340 = vld [vmem:[#allocation3 + $0x18] sm:$0xff]
        %v1341 = vld [vmem:[#allocation3 + $0x20] sm:$0xff]
        %v1342 = vld [vmem:[#allocation3 + $0x2c] sm:$0xff]
        %v1343 = vld [vmem:[#allocation3 + $0x34] sm:$0xff]
        %v1344 = vld [vmem:[#allocation3 + $0x40] sm:$0xff]
        %v1345 = vld [vmem:[#allocation3 + $0x48] sm:$0xff]
        %1354 = vrot.lane.b32.xlu0 %v1338, 111
        %v1355 = vpop.permute.xlu0 %1354
        %1356 = vrot.lane.b32.xlu0 %v1339, 111
        %v1357 = vpop.permute.xlu0 %1356
        %1358 = vrot.lane.b32.xlu0 %v1340, 111
        %v1359 = vpop.permute.xlu0 %1358
        %1360 = vrot.lane.b32.xlu0 %v1341, 111
        %v1361 = vpop.permute.xlu0 %1360
        %1362 = vrot.lane.b32.xlu0 %v1342, 111
        %v1363 = vpop.permute.xlu0 %1362
        %1364 = vrot.lane.b32.xlu0 %v1343, 111
        %v1365 = vpop.permute.xlu0 %1364
        %1366 = vrot.lane.b32.xlu0 %v1344, 111
        %v1367 = vpop.permute.xlu0 %1366
        %1368 = vrot.lane.b32.xlu0 %v1345, 111
        %v1369 = vpop.permute.xlu0 %1368
        %v1370 = vrot.slane %v1355, 4
        %v1371 = vrot.slane %v1357, 4
        %v1372 = vrot.slane %v1359, 4
        %v1373 = vrot.slane %v1361, 4
        %v1374 = vrot.slane %v1363, 4
        %v1375 = vrot.slane %v1365, 4
        %v1376 = vrot.slane %v1367, 4
        %v1377 = vrot.slane %v1369, 4
        %v1378 = vsel %vm311, %v1370, %v1371
        %v1379 = vsel %vm496, %v1355, %v1378
        %v1380 = vsel %vm496, %v1357, %v1371
        %v1381 = vsel %vm311, %v1372, %v1373
        %v1382 = vsel %vm496, %v1359, %v1381
        %v1383 = vsel %vm496, %v1361, %v1373
        %v1384 = vsel %vm311, %v1374, %v1375
        %v1385 = vsel %vm496, %v1363, %v1384
        %v1386 = vsel %vm496, %v1365, %v1375
        %v1387 = vsel %vm311, %v1376, %v1377
        %v1388 = vsel %vm496, %v1367, %v1387
        %v1389 = vsel %vm496, %v1369, %v1377
        %1398 = vst [vmem:[#allocation4 + $0x120] sm:$0xff] %v1379
        %1399 = vst [vmem:[#allocation4 + $0x128] sm:$0xf] %v1380
        %1400 = vst [vmem:[#allocation4 + $0x12c] sm:$0xff] %v1382
        %1401 = vst [vmem:[#allocation4 + $0x134] sm:$0xf] %v1383
        %1402 = vst [vmem:[#allocation4 + $0x138] sm:$0xff] %v1385
        %1403 = vst [vmem:[#allocation4 + $0x140] sm:$0xf] %v1386
        %1404 = vst [vmem:[#allocation4 + $0x144] sm:$0xff] %v1388
        %1405 = vst [vmem:[#allocation4 + $0x14c] sm:$0xf] %v1389
        %v1406 = vld [vmem:[#allocation3 + $0x4] sm:$0xff]
        %v1407 = vld [vmem:[#allocation3 + $0xc] sm:$0xff]
        %v1408 = vld [vmem:[#allocation3 + $0x18] sm:$0xff]
        %v1409 = vld [vmem:[#allocation3 + $0x20] sm:$0xff]
        %v1410 = vld [vmem:[#allocation3 + $0x2c] sm:$0xff]
        %v1411 = vld [vmem:[#allocation3 + $0x34] sm:$0xff]
        %v1412 = vld [vmem:[#allocation3 + $0x40] sm:$0xff]
        %v1413 = vld [vmem:[#allocation3 + $0x48] sm:$0xff]
        %1422 = vrot.lane.b32.xlu0 %v1406, 110
        %v1423 = vpop.permute.xlu0 %1422
        %1424 = vrot.lane.b32.xlu0 %v1407, 110
        %v1425 = vpop.permute.xlu0 %1424
        %1426 = vrot.lane.b32.xlu0 %v1408, 110
        %v1427 = vpop.permute.xlu0 %1426
        %1428 = vrot.lane.b32.xlu0 %v1409, 110
        %v1429 = vpop.permute.xlu0 %1428
        %1430 = vrot.lane.b32.xlu0 %v1410, 110
        %v1431 = vpop.permute.xlu0 %1430
        %1432 = vrot.lane.b32.xlu0 %v1411, 110
        %v1433 = vpop.permute.xlu0 %1432
        %1434 = vrot.lane.b32.xlu0 %v1412, 110
        %v1435 = vpop.permute.xlu0 %1434
        %1436 = vrot.lane.b32.xlu0 %v1413, 110
        %v1437 = vpop.permute.xlu0 %1436
        %v1438 = vrot.slane %v1423, 4
        %v1439 = vrot.slane %v1425, 4
        %v1440 = vrot.slane %v1427, 4
        %v1441 = vrot.slane %v1429, 4
        %v1442 = vrot.slane %v1431, 4
        %v1443 = vrot.slane %v1433, 4
        %v1444 = vrot.slane %v1435, 4
        %v1445 = vrot.slane %v1437, 4
        %v1446 = vsel %vm311, %v1438, %v1439
        %v1447 = vsel %vm531, %v1423, %v1446
        %v1448 = vsel %vm531, %v1425, %v1439
        %v1449 = vsel %vm311, %v1440, %v1441
        %v1450 = vsel %vm531, %v1427, %v1449
        %v1451 = vsel %vm531, %v1429, %v1441
        %v1452 = vsel %vm311, %v1442, %v1443
        %v1453 = vsel %vm531, %v1431, %v1452
        %v1454 = vsel %vm531, %v1433, %v1443
        %v1455 = vsel %vm311, %v1444, %v1445
        %v1456 = vsel %vm531, %v1435, %v1455
        %v1457 = vsel %vm531, %v1437, %v1445
        %1466 = vst [vmem:[#allocation4 + $0x150] sm:$0xff] %v1447
        %1467 = vst [vmem:[#allocation4 + $0x158] sm:$0xf] %v1448
        %1468 = vst [vmem:[#allocation4 + $0x15c] sm:$0xff] %v1450
        %1469 = vst [vmem:[#allocation4 + $0x164] sm:$0xf] %v1451
        %1470 = vst [vmem:[#allocation4 + $0x168] sm:$0xff] %v1453
        %1471 = vst [vmem:[#allocation4 + $0x170] sm:$0xf] %v1454
        %1472 = vst [vmem:[#allocation4 + $0x174] sm:$0xff] %v1456
        %1473 = vst [vmem:[#allocation4 + $0x17c] sm:$0xf] %v1457
        %v1474 = vld [vmem:[#allocation3 + $0x4] sm:$0xff]
        %v1475 = vld [vmem:[#allocation3 + $0xc] sm:$0xff]
        %v1476 = vld [vmem:[#allocation3 + $0x18] sm:$0xff]
        %v1477 = vld [vmem:[#allocation3 + $0x20] sm:$0xff]
        %v1478 = vld [vmem:[#allocation3 + $0x2c] sm:$0xff]
        %v1479 = vld [vmem:[#allocation3 + $0x34] sm:$0xff]
        %v1480 = vld [vmem:[#allocation3 + $0x40] sm:$0xff]
        %v1481 = vld [vmem:[#allocation3 + $0x48] sm:$0xff]
        %1490 = vrot.lane.b32.xlu0 %v1474, 109
        %v1491 = vpop.permute.xlu0 %1490
        %1492 = vrot.lane.b32.xlu0 %v1475, 109
        %v1493 = vpop.permute.xlu0 %1492
        %1494 = vrot.lane.b32.xlu0 %v1476, 109
        %v1495 = vpop.permute.xlu0 %1494
        %1496 = vrot.lane.b32.xlu0 %v1477, 109
        %v1497 = vpop.permute.xlu0 %1496
        %1498 = vrot.lane.b32.xlu0 %v1478, 109
        %v1499 = vpop.permute.xlu0 %1498
        %1500 = vrot.lane.b32.xlu0 %v1479, 109
        %v1501 = vpop.permute.xlu0 %1500
        %1502 = vrot.lane.b32.xlu0 %v1480, 109
        %v1503 = vpop.permute.xlu0 %1502
        %1504 = vrot.lane.b32.xlu0 %v1481, 109
        %v1505 = vpop.permute.xlu0 %1504
        %v1506 = vrot.slane %v1491, 4
        %v1507 = vrot.slane %v1493, 4
        %v1508 = vrot.slane %v1495, 4
        %v1509 = vrot.slane %v1497, 4
        %v1510 = vrot.slane %v1499, 4
        %v1511 = vrot.slane %v1501, 4
        %v1512 = vrot.slane %v1503, 4
        %v1513 = vrot.slane %v1505, 4
        %v1514 = vsel %vm311, %v1506, %v1507
        %v1515 = vsel %vm566, %v1491, %v1514
        %v1516 = vsel %vm566, %v1493, %v1507
        %v1517 = vsel %vm311, %v1508, %v1509
        %v1518 = vsel %vm566, %v1495, %v1517
        %v1519 = vsel %vm566, %v1497, %v1509
        %v1520 = vsel %vm311, %v1510, %v1511
        %v1521 = vsel %vm566, %v1499, %v1520
        %v1522 = vsel %vm566, %v1501, %v1511
        %v1523 = vsel %vm311, %v1512, %v1513
        %v1524 = vsel %vm566, %v1503, %v1523
        %v1525 = vsel %vm566, %v1505, %v1513
        %1534 = vst [vmem:[#allocation4 + $0x180] sm:$0xff] %v1515
        %1535 = vst [vmem:[#allocation4 + $0x188] sm:$0xf] %v1516
        %1536 = vst [vmem:[#allocation4 + $0x18c] sm:$0xff] %v1518
        %1537 = vst [vmem:[#allocation4 + $0x194] sm:$0xf] %v1519
        %1538 = vst [vmem:[#allocation4 + $0x198] sm:$0xff] %v1521
        %1539 = vst [vmem:[#allocation4 + $0x1a0] sm:$0xf] %v1522
        %1540 = vst [vmem:[#allocation4 + $0x1a4] sm:$0xff] %v1524
        %1541 = vst [vmem:[#allocation4 + $0x1ac] sm:$0xf] %v1525
        %v1542 = vld [vmem:[%s3] sm:$0xff]
        %v1543 = vld [vmem:[%s3 + $0x8] sm:$0xf]
        %v1544 = vld [vmem:[%s3 + $0xc] sm:$0xff]
        %v1545 = vld [vmem:[%s3 + $0x14] sm:$0xf]
        %v1546 = vld [vmem:[%s3 + $0x18] sm:$0xff]
        %v1547 = vld [vmem:[%s3 + $0x20] sm:$0xf]
        %v1548 = vld [vmem:[%s3 + $0x24] sm:$0xff]
        %v1549 = vld [vmem:[%s3 + $0x2c] sm:$0xf]
        %v1550 = vld [vmem:[#allocation4] sm:$0xff]
        %v1551 = vld [vmem:[#allocation4 + $0x8] sm:$0xf]
        %v1552 = vld [vmem:[#allocation4 + $0xc] sm:$0xff]
        %v1553 = vld [vmem:[#allocation4 + $0x14] sm:$0xf]
        %v1554 = vld [vmem:[#allocation4 + $0x18] sm:$0xff]
        %v1555 = vld [vmem:[#allocation4 + $0x20] sm:$0xf]
        %v1556 = vld [vmem:[#allocation4 + $0x24] sm:$0xff]
        %v1557 = vld [vmem:[#allocation4 + $0x2c] sm:$0xf]
        %v1558 = vld [vmem:[#allocation4 + $0x30] sm:$0xff]
        %v1559 = vld [vmem:[#allocation4 + $0x38] sm:$0xf]
        %v1560 = vld [vmem:[#allocation4 + $0x3c] sm:$0xff]
        %v1561 = vld [vmem:[#allocation4 + $0x44] sm:$0xf]
        %v1562 = vld [vmem:[#allocation4 + $0x48] sm:$0xff]
        %v1563 = vld [vmem:[#allocation4 + $0x50] sm:$0xf]
        %v1564 = vld [vmem:[#allocation4 + $0x54] sm:$0xff]
        %v1565 = vld [vmem:[#allocation4 + $0x5c] sm:$0xf]
        %v1566 = vld [vmem:[#allocation4 + $0x60] sm:$0xff]
        %v1567 = vld [vmem:[#allocation4 + $0x68] sm:$0xf]
        %v1568 = vld [vmem:[#allocation4 + $0x6c] sm:$0xff]
        %v1569 = vld [vmem:[#allocation4 + $0x74] sm:$0xf]
        %v1570 = vld [vmem:[#allocation4 + $0x78] sm:$0xff]
        %v1571 = vld [vmem:[#allocation4 + $0x80] sm:$0xf]
        %v1572 = vld [vmem:[#allocation4 + $0x84] sm:$0xff]
        %v1573 = vld [vmem:[#allocation4 + $0x8c] sm:$0xf]
        %v1574 = vld [vmem:[#allocation4 + $0x90] sm:$0xff]
        %v1575 = vld [vmem:[#allocation4 + $0x98] sm:$0xf]
        %v1576 = vld [vmem:[#allocation4 + $0x9c] sm:$0xff]
        %v1577 = vld [vmem:[#allocation4 + $0xa4] sm:$0xf]
        %v1578 = vld [vmem:[#allocation4 + $0xa8] sm:$0xff]
        %v1579 = vld [vmem:[#allocation4 + $0xb0] sm:$0xf]
        %v1580 = vld [vmem:[#allocation4 + $0xb4] sm:$0xff]
        %v1581 = vld [vmem:[#allocation4 + $0xbc] sm:$0xf]
        %v1582 = vld [vmem:[#allocation4 + $0xc0] sm:$0xff]
        %v1583 = vld [vmem:[#allocation4 + $0xc8] sm:$0xf]
        %v1584 = vld [vmem:[#allocation4 + $0xcc] sm:$0xff]
        %v1585 = vld [vmem:[#allocation4 + $0xd4] sm:$0xf]
        %v1586 = vld [vmem:[#allocation4 + $0xd8] sm:$0xff]
        %v1587 = vld [vmem:[#allocation4 + $0xe0] sm:$0xf]
        %v1588 = vld [vmem:[#allocation4 + $0xe4] sm:$0xff]
        %v1589 = vld [vmem:[#allocation4 + $0xec] sm:$0xf]
        %v1590 = vld [vmem:[#allocation4 + $0xf0] sm:$0xff]
        %v1591 = vld [vmem:[#allocation4 + $0xf8] sm:$0xf]
        %v1592 = vld [vmem:[#allocation4 + $0xfc] sm:$0xff]
        %v1593 = vld [vmem:[#allocation4 + $0x104] sm:$0xf]
        %v1594 = vld [vmem:[#allocation4 + $0x108] sm:$0xff]
        %v1595 = vld [vmem:[#allocation4 + $0x110] sm:$0xf]
        %v1596 = vld [vmem:[#allocation4 + $0x114] sm:$0xff]
        %v1597 = vld [vmem:[#allocation4 + $0x11c] sm:$0xf]
        %v1598 = vld [vmem:[#allocation4 + $0x120] sm:$0xff]
        %v1599 = vld [vmem:[#allocation4 + $0x128] sm:$0xf]
        %v1600 = vld [vmem:[#allocation4 + $0x12c] sm:$0xff]
        %v1601 = vld [vmem:[#allocation4 + $0x134] sm:$0xf]
        %v1602 = vld [vmem:[#allocation4 + $0x138] sm:$0xff]
        %v1603 = vld [vmem:[#allocation4 + $0x140] sm:$0xf]
        %v1604 = vld [vmem:[#allocation4 + $0x144] sm:$0xff]
        %v1605 = vld [vmem:[#allocation4 + $0x14c] sm:$0xf]
        %v1606 = vld [vmem:[#allocation4 + $0x150] sm:$0xff]
        %v1607 = vld [vmem:[#allocation4 + $0x158] sm:$0xf]
        %v1608 = vld [vmem:[#allocation4 + $0x15c] sm:$0xff]
        %v1609 = vld [vmem:[#allocation4 + $0x164] sm:$0xf]
        %v1610 = vld [vmem:[#allocation4 + $0x168] sm:$0xff]
        %v1611 = vld [vmem:[#allocation4 + $0x170] sm:$0xf]
        %v1612 = vld [vmem:[#allocation4 + $0x174] sm:$0xff]
        %v1613 = vld [vmem:[#allocation4 + $0x17c] sm:$0xf]
        %v1614 = vld [vmem:[#allocation4 + $0x180] sm:$0xff]
        %v1615 = vld [vmem:[#allocation4 + $0x188] sm:$0xf]
        %v1616 = vld [vmem:[#allocation4 + $0x18c] sm:$0xff]
        %v1617 = vld [vmem:[#allocation4 + $0x194] sm:$0xf]
        %v1618 = vld [vmem:[#allocation4 + $0x198] sm:$0xff]
        %v1619 = vld [vmem:[#allocation4 + $0x1a0] sm:$0xf]
        %v1620 = vld [vmem:[#allocation4 + $0x1a4] sm:$0xff]
        %v1621 = vld [vmem:[#allocation4 + $0x1ac] sm:$0xf]
        %v1622 = vld [vmem:[%s4] sm:$0xff]
        %v1623 = vld [vmem:[%s4 + $0x8] sm:$0xff]
        %v1624 = vld [vmem:[%s4 + $0x10] sm:$0xff]
        %v1625 = vld [vmem:[%s4 + $0x18] sm:$0xff]
        %1627 = vset.pattern.permute.xlu0 0
        %1628 = vperm.xlu0 %1627, %v1622
        %v1629 = vpop.permute.xlu0 %1628
        %1632 = vset.pattern.permute.xlu0 0
        %1633 = vperm.xlu0 %1632, %v1623
        %v1634 = vpop.permute.xlu0 %1633
        %1637 = vset.pattern.permute.xlu0 0
        %1638 = vperm.xlu0 %1637, %v1624
        %v1639 = vpop.permute.xlu0 %1638
        %1642 = vset.pattern.permute.xlu0 0
        %1643 = vperm.xlu0 %1642, %v1625
        %v1644 = vpop.permute.xlu0 %1643
        %v1654 = vunpack.c.l.b16 %v1542
        %v1655 = vunpack.c.h.b16 %v1542
        %v1656 = vunpack.c.l.b16 %v1543
        %v1657 = vunpack.c.l.b16 %v1544
        %v1658 = vunpack.c.h.b16 %v1544
        %v1659 = vunpack.c.l.b16 %v1545
        %v1660 = vunpack.c.l.b16 %v1546
        %v1661 = vunpack.c.h.b16 %v1546
        %v1662 = vunpack.c.l.b16 %v1547
        %v1663 = vunpack.c.l.b16 %v1548
        %v1664 = vunpack.c.h.b16 %v1548
        %v1665 = vunpack.c.l.b16 %v1549
        %v1666 = vpack.c.b16 %v1657, %v1654
        %v1667 = vpack.c.b16 %v1658, %v1655
        %v1668 = vpack.c.b16 %v1659, %v1656
        %v1669 = vpack.c.b16 %v1663, %v1660
        %v1670 = vpack.c.b16 %v1664, %v1661
        %v1671 = vpack.c.b16 %v1665, %v1662
        %v1748 = vunpack.c.l.b16 %v1550
        %v1749 = vunpack.c.h.b16 %v1550
        %v1750 = vunpack.c.l.b16 %v1551
        %v1751 = vunpack.c.l.b16 %v1552
        %v1752 = vunpack.c.h.b16 %v1552
        %v1753 = vunpack.c.l.b16 %v1553
        %v1754 = vunpack.c.l.b16 %v1554
        %v1755 = vunpack.c.h.b16 %v1554
        %v1756 = vunpack.c.l.b16 %v1555
        %v1757 = vunpack.c.l.b16 %v1556
        %v1758 = vunpack.c.h.b16 %v1556
        %v1759 = vunpack.c.l.b16 %v1557
        %v1760 = vunpack.c.l.b16 %v1558
        %v1761 = vunpack.c.h.b16 %v1558
        %v1762 = vunpack.c.l.b16 %v1559
        %v1763 = vunpack.c.l.b16 %v1560
        %v1764 = vunpack.c.h.b16 %v1560
        %v1765 = vunpack.c.l.b16 %v1561
        %v1766 = vunpack.c.l.b16 %v1562
        %v1767 = vunpack.c.h.b16 %v1562
        %v1768 = vunpack.c.l.b16 %v1563
        %v1769 = vunpack.c.l.b16 %v1564
        %v1770 = vunpack.c.h.b16 %v1564
        %v1771 = vunpack.c.l.b16 %v1565
        %v1772 = vunpack.c.l.b16 %v1566
        %v1773 = vunpack.c.h.b16 %v1566
        %v1774 = vunpack.c.l.b16 %v1567
        %v1775 = vunpack.c.l.b16 %v1568
        %v1776 = vunpack.c.h.b16 %v1568
        %v1777 = vunpack.c.l.b16 %v1569
        %v1778 = vunpack.c.l.b16 %v1570
        %v1779 = vunpack.c.h.b16 %v1570
        %v1780 = vunpack.c.l.b16 %v1571
        %v1781 = vunpack.c.l.b16 %v1572
        %v1782 = vunpack.c.h.b16 %v1572
        %v1783 = vunpack.c.l.b16 %v1573
        %v1784 = vunpack.c.l.b16 %v1574
        %v1785 = vunpack.c.h.b16 %v1574
        %v1786 = vunpack.c.l.b16 %v1575
        %v1787 = vunpack.c.l.b16 %v1576
        %v1788 = vunpack.c.h.b16 %v1576
        %v1789 = vunpack.c.l.b16 %v1577
        %v1790 = vunpack.c.l.b16 %v1578
        %v1791 = vunpack.c.h.b16 %v1578
        %v1792 = vunpack.c.l.b16 %v1579
        %v1793 = vunpack.c.l.b16 %v1580
        %v1794 = vunpack.c.h.b16 %v1580
        %v1795 = vunpack.c.l.b16 %v1581
        %v1796 = vunpack.c.l.b16 %v1582
        %v1797 = vunpack.c.h.b16 %v1582
        %v1798 = vunpack.c.l.b16 %v1583
        %v1799 = vunpack.c.l.b16 %v1584
        %v1800 = vunpack.c.h.b16 %v1584
        %v1801 = vunpack.c.l.b16 %v1585
        %v1802 = vunpack.c.l.b16 %v1586
        %v1803 = vunpack.c.h.b16 %v1586
        %v1804 = vunpack.c.l.b16 %v1587
        %v1805 = vunpack.c.l.b16 %v1588
        %v1806 = vunpack.c.h.b16 %v1588
        %v1807 = vunpack.c.l.b16 %v1589
        %v1808 = vunpack.c.l.b16 %v1590
        %v1809 = vunpack.c.h.b16 %v1590
        %v1810 = vunpack.c.l.b16 %v1591
        %v1811 = vunpack.c.l.b16 %v1592
        %v1812 = vunpack.c.h.b16 %v1592
        %v1813 = vunpack.c.l.b16 %v1593
        %v1814 = vunpack.c.l.b16 %v1594
        %v1815 = vunpack.c.h.b16 %v1594
        %v1816 = vunpack.c.l.b16 %v1595
        %v1817 = vunpack.c.l.b16 %v1596
        %v1818 = vunpack.c.h.b16 %v1596
        %v1819 = vunpack.c.l.b16 %v1597
        %v1820 = vunpack.c.l.b16 %v1598
        %v1821 = vunpack.c.h.b16 %v1598
        %v1822 = vunpack.c.l.b16 %v1599
        %v1823 = vunpack.c.l.b16 %v1600
        %v1824 = vunpack.c.h.b16 %v1600
        %v1825 = vunpack.c.l.b16 %v1601
        %v1826 = vunpack.c.l.b16 %v1602
        %v1827 = vunpack.c.h.b16 %v1602
        %v1828 = vunpack.c.l.b16 %v1603
        %v1829 = vunpack.c.l.b16 %v1604
        %v1830 = vunpack.c.h.b16 %v1604
        %v1831 = vunpack.c.l.b16 %v1605
        %v1832 = vunpack.c.l.b16 %v1606
        %v1833 = vunpack.c.h.b16 %v1606
        %v1834 = vunpack.c.l.b16 %v1607
        %v1835 = vunpack.c.l.b16 %v1608
        %v1836 = vunpack.c.h.b16 %v1608
        %v1837 = vunpack.c.l.b16 %v1609
        %v1838 = vunpack.c.l.b16 %v1610
        %v1839 = vunpack.c.h.b16 %v1610
        %v1840 = vunpack.c.l.b16 %v1611
        %v1841 = vunpack.c.l.b16 %v1612
        %v1842 = vunpack.c.h.b16 %v1612
        %v1843 = vunpack.c.l.b16 %v1613
        %v1844 = vunpack.c.l.b16 %v1614
        %v1845 = vunpack.c.h.b16 %v1614
        %v1846 = vunpack.c.l.b16 %v1615
        %v1847 = vunpack.c.l.b16 %v1616
        %v1848 = vunpack.c.h.b16 %v1616
        %v1849 = vunpack.c.l.b16 %v1617
        %v1850 = vunpack.c.l.b16 %v1618
        %v1851 = vunpack.c.h.b16 %v1618
        %v1852 = vunpack.c.l.b16 %v1619
        %v1853 = vunpack.c.l.b16 %v1620
        %v1854 = vunpack.c.h.b16 %v1620
        %v1855 = vunpack.c.l.b16 %v1621
        %v1856 = vpack.c.b16 %v1751, %v1748
        %v1857 = vpack.c.b16 %v1752, %v1749
        %v1858 = vpack.c.b16 %v1753, %v1750
        %v1859 = vpack.c.b16 %v1757, %v1754
        %v1860 = vpack.c.b16 %v1758, %v1755
        %v1861 = vpack.c.b16 %v1759, %v1756
        %v1862 = vpack.c.b16 %v1763, %v1760
        %v1863 = vpack.c.b16 %v1764, %v1761
        %v1864 = vpack.c.b16 %v1765, %v1762
        %v1865 = vpack.c.b16 %v1769, %v1766
        %v1866 = vpack.c.b16 %v1770, %v1767
        %v1867 = vpack.c.b16 %v1771, %v1768
        %v1868 = vpack.c.b16 %v1775, %v1772
        %v1869 = vpack.c.b16 %v1776, %v1773
        %v1870 = vpack.c.b16 %v1777, %v1774
        %v1871 = vpack.c.b16 %v1781, %v1778
        %v1872 = vpack.c.b16 %v1782, %v1779
        %v1873 = vpack.c.b16 %v1783, %v1780
        %v1874 = vpack.c.b16 %v1787, %v1784
        %v1875 = vpack.c.b16 %v1788, %v1785
        %v1876 = vpack.c.b16 %v1789, %v1786
        %v1877 = vpack.c.b16 %v1793, %v1790
        %v1878 = vpack.c.b16 %v1794, %v1791
        %v1879 = vpack.c.b16 %v1795, %v1792
        %v1880 = vpack.c.b16 %v1799, %v1796
        %v1881 = vpack.c.b16 %v1800, %v1797
        %v1882 = vpack.c.b16 %v1801, %v1798
        %v1883 = vpack.c.b16 %v1805, %v1802
        %v1884 = vpack.c.b16 %v1806, %v1803
        %v1885 = vpack.c.b16 %v1807, %v1804
        %v1886 = vpack.c.b16 %v1811, %v1808
        %v1887 = vpack.c.b16 %v1812, %v1809
        %v1888 = vpack.c.b16 %v1813, %v1810
        %v1889 = vpack.c.b16 %v1817, %v1814
        %v1890 = vpack.c.b16 %v1818, %v1815
        %v1891 = vpack.c.b16 %v1819, %v1816
        %v1892 = vpack.c.b16 %v1823, %v1820
        %v1893 = vpack.c.b16 %v1824, %v1821
        %v1894 = vpack.c.b16 %v1825, %v1822
        %v1895 = vpack.c.b16 %v1829, %v1826
        %v1896 = vpack.c.b16 %v1830, %v1827
        %v1897 = vpack.c.b16 %v1831, %v1828
        %v1898 = vpack.c.b16 %v1835, %v1832
        %v1899 = vpack.c.b16 %v1836, %v1833
        %v1900 = vpack.c.b16 %v1837, %v1834
        %v1901 = vpack.c.b16 %v1841, %v1838
        %v1902 = vpack.c.b16 %v1842, %v1839
        %v1903 = vpack.c.b16 %v1843, %v1840
        %v1904 = vpack.c.b16 %v1847, %v1844
        %v1905 = vpack.c.b16 %v1848, %v1845
        %v1906 = vpack.c.b16 %v1849, %v1846
        %v1907 = vpack.c.b16 %v1853, %v1850
        %v1908 = vpack.c.b16 %v1854, %v1851
        %v1909 = vpack.c.b16 %v1855, %v1852
        %vm1964 = vcmask 261120
        %v1966 = vsel %vm1964, %v1668, 0
        %v1969 = vsel %vm1964, %v1671, 0
        %1971 = vmatpush.bf16.msra.mxu0 %v1877
        %1972 = vmatpush.bf16.msra.mxu0 %v1874
        %1973 = vmatpush.bf16.msra.mxu0 %v1871
        %1974 = vmatpush.bf16.msra.mxu0 %v1868
        %1975 = vmatpush.bf16.msra.mxu0 %v1865
        %1976 = vmatpush.bf16.msra.mxu0 %v1862
        %1977 = vmatpush.bf16.msra.mxu0 %v1859
        %1978 = vmatpush.bf16.msra.mxu0 %v1856
        %1979 = vmatmul.bf16.gmra.mxu0 %v1666
        %v1980 = vpop.f32.mrf.mxu0
        %v1981 = vadd.f32 %v1629, %v1980
        %v1982 = vpop.f32.mrf.mxu0
        %v1983 = vadd.f32 %v1634, %v1982
        %1984 = vmatmul.bf16.gmra.mxu0 %v1669
        %v1985 = vpop.f32.mrf.mxu0
        %v1986 = vadd.f32 %v1639, %v1985
        %v1987 = vpop.f32.mrf.mxu0
        %v1988 = vadd.f32 %v1644, %v1987
        %1989 = vdwg.mxu0
        %1990 = vmatpush.bf16.msra.mxu0 %v1901
        %1991 = vmatpush.bf16.msra.mxu0 %v1898
        %1992 = vmatpush.bf16.msra.mxu0 %v1895
        %1993 = vmatpush.bf16.msra.mxu0 %v1892
        %1994 = vmatpush.bf16.msra.mxu0 %v1889
        %1995 = vmatpush.bf16.msra.mxu0 %v1886
        %1996 = vmatpush.bf16.msra.mxu0 %v1883
        %1997 = vmatpush.bf16.msra.mxu0 %v1880
        %1998 = vmatmul.bf16.gmra.mxu0 %v1667
        %v1999 = vpop.f32.mrf.mxu0
        %v2000 = vadd.f32 %v1981, %v1999
        %v2001 = vpop.f32.mrf.mxu0
        %v2002 = vadd.f32 %v1983, %v2001
        %2003 = vmatmul.bf16.gmra.mxu0 %v1670
        %v2004 = vpop.f32.mrf.mxu0
        %v2005 = vadd.f32 %v1986, %v2004
        %v2006 = vpop.f32.mrf.mxu0
        %v2007 = vadd.f32 %v1988, %v2006
        %2008 = vdwg.mxu0
        %2009 = vmatpush.bf16.msra.mxu0 0
        %2010 = vmatpush.bf16.msra.mxu0 0
        %2011 = vmatpush.bf16.msra.mxu0 0
        %2012 = vmatpush.bf16.msra.mxu0 0
        %2013 = vmatpush.bf16.msra.mxu0 0
        %2014 = vmatpush.bf16.msra.mxu0 0
        %2015 = vmatpush.bf16.msra.mxu0 %v1907
        %2016 = vmatpush.bf16.msra.mxu0 %v1904
        %2017 = vmatmul.bf16.gmra.mxu0 %v1966
        %v2018 = vpop.f32.mrf.mxu0
        %v2019 = vadd.f32 %v2000, %v2018
        %v2020 = vpop.f32.mrf.mxu0
        %v2021 = vadd.f32 %v2002, %v2020
        %2022 = vmatmul.bf16.gmra.mxu0 %v1969
        %v2023 = vpop.f32.mrf.mxu0
        %v2024 = vadd.f32 %v2005, %v2023
        %v2025 = vpop.f32.mrf.mxu0
        %v2026 = vadd.f32 %v2007, %v2025
        %2027 = vdwg.mxu0
        %2028 = vmatpush.bf16.msra.mxu0 %v1878
        %2029 = vmatpush.bf16.msra.mxu0 %v1875
        %2030 = vmatpush.bf16.msra.mxu0 %v1872
        %2031 = vmatpush.bf16.msra.mxu0 %v1869
        %2032 = vmatpush.bf16.msra.mxu0 %v1866
        %2033 = vmatpush.bf16.msra.mxu0 %v1863
        %2034 = vmatpush.bf16.msra.mxu0 %v1860
        %2035 = vmatpush.bf16.msra.mxu0 %v1857
        %2036 = vmatmul.bf16.gmra.mxu0 %v1666
        %v2037 = vpop.f32.mrf.mxu0
        %v2038 = vadd.f32 %v1629, %v2037
        %v2039 = vpop.f32.mrf.mxu0
        %v2040 = vadd.f32 %v1634, %v2039
        %2041 = vmatmul.bf16.gmra.mxu0 %v1669
        %v2042 = vpop.f32.mrf.mxu0
        %v2043 = vadd.f32 %v1639, %v2042
        %v2044 = vpop.f32.mrf.mxu0
        %v2045 = vadd.f32 %v1644, %v2044
        %2046 = vdwg.mxu0
        %2047 = vmatpush.bf16.msra.mxu0 %v1902
        %2048 = vmatpush.bf16.msra.mxu0 %v1899
        %2049 = vmatpush.bf16.msra.mxu0 %v1896
        %2050 = vmatpush.bf16.msra.mxu0 %v1893
        %2051 = vmatpush.bf16.msra.mxu0 %v1890
        %2052 = vmatpush.bf16.msra.mxu0 %v1887
        %2053 = vmatpush.bf16.msra.mxu0 %v1884
        %2054 = vmatpush.bf16.msra.mxu0 %v1881
        %2055 = vmatmul.bf16.gmra.mxu0 %v1667
        %v2056 = vpop.f32.mrf.mxu0
        %v2057 = vadd.f32 %v2038, %v2056
        %v2058 = vpop.f32.mrf.mxu0
        %v2059 = vadd.f32 %v2040, %v2058
        %2060 = vmatmul.bf16.gmra.mxu0 %v1670
        %v2061 = vpop.f32.mrf.mxu0
        %v2062 = vadd.f32 %v2043, %v2061
        %v2063 = vpop.f32.mrf.mxu0
        %v2064 = vadd.f32 %v2045, %v2063
        %2065 = vdwg.mxu0
        %2066 = vmatpush.bf16.msra.mxu0 0
        %2067 = vmatpush.bf16.msra.mxu0 0
        %2068 = vmatpush.bf16.msra.mxu0 0
        %2069 = vmatpush.bf16.msra.mxu0 0
        %2070 = vmatpush.bf16.msra.mxu0 0
        %2071 = vmatpush.bf16.msra.mxu0 0
        %2072 = vmatpush.bf16.msra.mxu0 %v1908
        %2073 = vmatpush.bf16.msra.mxu0 %v1905
        %2074 = vmatmul.bf16.gmra.mxu0 %v1966
        %v2075 = vpop.f32.mrf.mxu0
        %v2076 = vadd.f32 %v2057, %v2075
        %v2077 = vpop.f32.mrf.mxu0
        %v2078 = vadd.f32 %v2059, %v2077
        %2079 = vmatmul.bf16.gmra.mxu0 %v1969
        %v2080 = vpop.f32.mrf.mxu0
        %v2081 = vadd.f32 %v2062, %v2080
        %v2082 = vpop.f32.mrf.mxu0
        %v2083 = vadd.f32 %v2064, %v2082
        %2084 = vdwg.mxu0
        %2085 = vmatpush.bf16.msra.mxu0 %v1879
        %2086 = vmatpush.bf16.msra.mxu0 %v1876
        %2087 = vmatpush.bf16.msra.mxu0 %v1873
        %2088 = vmatpush.bf16.msra.mxu0 %v1870
        %2089 = vmatpush.bf16.msra.mxu0 %v1867
        %2090 = vmatpush.bf16.msra.mxu0 %v1864
        %2091 = vmatpush.bf16.msra.mxu0 %v1861
        %2092 = vmatpush.bf16.msra.mxu0 %v1858
        %2093 = vmatmul.bf16.gmra.mxu0 %v1666
        %v2094 = vpop.f32.mrf.mxu0
        %v2095 = vadd.f32 %v1629, %v2094
        %v2096 = vpop.f32.mrf.mxu0
        %v2097 = vadd.f32 %v1634, %v2096
        %2098 = vmatmul.bf16.gmra.mxu0 %v1669
        %v2099 = vpop.f32.mrf.mxu0
        %v2100 = vadd.f32 %v1639, %v2099
        %v2101 = vpop.f32.mrf.mxu0
        %v2102 = vadd.f32 %v1644, %v2101
        %2103 = vdwg.mxu0
        %2104 = vmatpush.bf16.msra.mxu0 %v1903
        %2105 = vmatpush.bf16.msra.mxu0 %v1900
        %2106 = vmatpush.bf16.msra.mxu0 %v1897
        %2107 = vmatpush.bf16.msra.mxu0 %v1894
        %2108 = vmatpush.bf16.msra.mxu0 %v1891
        %2109 = vmatpush.bf16.msra.mxu0 %v1888
        %2110 = vmatpush.bf16.msra.mxu0 %v1885
        %2111 = vmatpush.bf16.msra.mxu0 %v1882
        %2112 = vmatmul.bf16.gmra.mxu0 %v1667
        %v2113 = vpop.f32.mrf.mxu0
        %v2114 = vadd.f32 %v2095, %v2113
        %v2115 = vpop.f32.mrf.mxu0
        %v2116 = vadd.f32 %v2097, %v2115
        %2117 = vmatmul.bf16.gmra.mxu0 %v1670
        %v2118 = vpop.f32.mrf.mxu0
        %v2119 = vadd.f32 %v2100, %v2118
        %v2120 = vpop.f32.mrf.mxu0
        %v2121 = vadd.f32 %v2102, %v2120
        %2122 = vdwg.mxu0
        %2123 = vmatpush.bf16.msra.mxu0 0
        %2124 = vmatpush.bf16.msra.mxu0 0
        %2125 = vmatpush.bf16.msra.mxu0 0
        %2126 = vmatpush.bf16.msra.mxu0 0
        %2127 = vmatpush.bf16.msra.mxu0 0
        %2128 = vmatpush.bf16.msra.mxu0 0
        %2129 = vmatpush.bf16.msra.mxu0 %v1909
        %2130 = vmatpush.bf16.msra.mxu0 %v1906
        %2131 = vmatmul.bf16.gmra.mxu0 %v1966
        %v2132 = vpop.f32.mrf.mxu0
        %v2133 = vadd.f32 %v2114, %v2132
        %v2134 = vpop.f32.mrf.mxu0
        %v2135 = vadd.f32 %v2116, %v2134
        %2136 = vmatmul.bf16.gmra.mxu0 %v1969
        %v2137 = vpop.f32.mrf.mxu0
        %v2138 = vadd.f32 %v2119, %v2137
        %v2139 = vpop.f32.mrf.mxu0
        %v2140 = vadd.f32 %v2121, %v2139
        %2141 = vdwg.mxu0
        %v2142 = vmax.f32 %v2019, 0.0
        %v2143 = vmax.f32 %v2076, 0.0
        %v2144 = vmax.f32 %v2133, 0.0
        %v2145 = vmax.f32 %v2021, 0.0
        %v2146 = vmax.f32 %v2078, 0.0
        %v2147 = vmax.f32 %v2135, 0.0
        %v2148 = vmax.f32 %v2024, 0.0
        %v2149 = vmax.f32 %v2081, 0.0
        %v2150 = vmax.f32 %v2138, 0.0
        %v2151 = vmax.f32 %v2026, 0.0
        %v2152 = vmax.f32 %v2083, 0.0
        %v2153 = vmax.f32 %v2140, 0.0
        %2154 = vst [vmem:[%s288] sm:$0xff] %v2142
        %2155 = vst [vmem:[%s288 + $0x8] sm:$0xff] %v2143
        %2156 = vst [vmem:[%s288 + $0x10] sm:$0xff] %v2144
        %2157 = vst [vmem:[%s288 + $0x18] sm:$0xff] %v2145
        %2158 = vst [vmem:[%s288 + $0x20] sm:$0xff] %v2146
        %2159 = vst [vmem:[%s288 + $0x28] sm:$0xff] %v2147
        %2160 = vst [vmem:[%s288 + $0x30] sm:$0xff] %v2148
        %2161 = vst [vmem:[%s288 + $0x38] sm:$0xff] %v2149
        %2162 = vst [vmem:[%s288 + $0x40] sm:$0xff] %v2150
        %2163 = vst [vmem:[%s288 + $0x48] sm:$0xff] %v2151
        %2164 = vst [vmem:[%s288 + $0x50] sm:$0xff] %v2152
        %2165 = vst [vmem:[%s288 + $0x58] sm:$0xff] %v2153
        %s2166 = sand.u32 %s163, 1
        %s2167 = scalar_lea.sflag [#allocation7], %s2166
        %s2168 = sand.u32 %s163, 1
        %s2169 = smul.addr %s2168, 96
        %s2170 = scalar_lea.vmem [#allocation10], %s2169
        // Predicated region
        $region53: #{tpu_custom_call.1} parent=43 // pred_check
          %p2171 = pneg %p173
        $region54: #{tpu_custom_call.1} parent=43 // pred_check_branch
          %2173 = sbr.rel (%p2171) target = $region56
        $region55: #{tpu_custom_call.1} parent=43 // pred_region
          %2175 = vsyncadd %s2167, 0
          %s2176 = smul.addr %s24, 12
          %s2177 = smul.addr %s2176, 8
          %s2178 = scalar_lea.hbm %s6, %s2177
          %s2179 = sshll.u32 %s2170, 4
          %s2180 = int_to_ptr.vmem [resolvable:$true] %s2179
          %s2181 = sshll.u32 %s2178, 4
          %s2182 = int_to_ptr.hbm [resolvable:$true] %s2181
          %2187 = dma.vmem_to_hbm [thread:$0]  %s2180, 1536, %s2182, %s2167, 384, 384, 24
        $region56: #{tpu_custom_call.1} parent=43 // pred_fallthru
          _
      $region44: #{tpu_custom_call.1} parent=5 // pred_fallthru
        _
      %p2188 = scmp.le.s32.totalorder 2, %s19
      // Predicated region
      $region57: #{tpu_custom_call.1} parent=5 // pred_check
        %p2189 = pneg %p2188
      $region58: #{tpu_custom_call.1} parent=5 // pred_check_branch
        %2191 = sbr.rel (%p2189) target = $region60
      $region59: #{tpu_custom_call.1} parent=5 // pred_region
        %s2192 = ssub.s32 %s19, 2
        // Predicated region
        $region61: #{tpu_custom_call.1} parent=59 // pred_check
          %p2193 = pneg %p179
        $region62: #{tpu_custom_call.1} parent=59 // pred_check_branch
          %2195 = sbr.rel (%p2193) target = $region64
        $region63: #{tpu_custom_call.1} parent=59 // pred_region
          %s2196 = sand.u32 %s164, 1
          %s2197 = scalar_lea.sflag [#allocation7], %s2196
          %s2198 = sand.u32 %s164, 1
          %s2199 = smul.addr %s2198, 96
          %s2200 = scalar_lea.vmem [#allocation10], %s2199
          %2202 = dma.done %s2197, 1536
        $region64: #{tpu_custom_call.1} parent=59 // pred_fallthru
          _
      $region60: #{tpu_custom_call.1} parent=5 // pred_fallthru
        _
    $region6: #{tpu_custom_call.1} parent=1 // loop_footer
      %s23 = sadd.s32 1, %s19
    $region7: #{tpu_custom_call.1} parent=1 // loop_footer_branch
      %18 = sbr.rel target = $region3
    $region8: #{tpu_custom_call.1} parent=1 // loop_exit
      _
    %2203 = vsyncpa [#allocation6], 1
    %s2204 = scalar_lea.sflag [#allocation6], 1
    %2205 = vsyncpa %s2204, 1
    %2206 = vsyncpa [#allocation9], 1
    %2207 = vsyncpa [#allocation7], 1
    %s2208 = scalar_lea.sflag [#allocation7], 1
    %2209 = vsyncpa %s2208, 1

</llo_original>
